<compile_context>
chip_gen: v5e
topology: v5e:2x2
jax: 0.10.0
libtpu: 0.0.40
codegen_flags: <defaults>
</compile_context>

<pallas_src>
import jax
import jax.numpy as jnp
from jax.experimental import pallas as pl
from jax.experimental.pallas import tpu as pltpu

EPS = 1e-5


# ----------------------------------------------------------------------------
# Fused kernel: deconv + concat + (1x1 shortcut, conv1+bn1+relu, conv2+bn2+res+relu)
# All activations are (H, 2*Wo*C) "double-row" slabs (row h = output rows 2h, 2h+1).
# ----------------------------------------------------------------------------
def _fused_kernel(x_ref, r_ref, wd_ref, w1_ref, w2_ref, ws_ref, bd_ref, ep_ref,
                  o_ref, xcp, o1p):
    H = x_ref.shape[1]

    ep = ep_ref[...]                       # (5, 2*Wo*Cout)
    sc1 = ep[0:1, :]
    sh1 = ep[1:2, :]
    sc2 = ep[2:3, :]
    sh2 = ep[3:4, :]
    bsv = ep[4:5, :]

    # Zero the vertical SAME-padding rows of the scratch slabs.  Done every step (cheap)
    # instead of pl.when(program_id==0) so it stays correct when the parallel batch grid
    # is sharded across TensorCores (scratch is per-core).
    zx = jnp.zeros((1, xcp.shape[1]), jnp.float32)
    zo = jnp.zeros((1, o1p.shape[1]), jnp.float32)
    xcp[0:1, :] = zx
    xcp[H + 1:H + 2, :] = zx
    o1p[0:1, :] = zo
    o1p[H + 1:H + 2, :] = zo

    # --- ConvTranspose2d(k=2, s=2): one (H, W*Cin) @ (W*Cin, 2*Wo*Cmid) matmul.
    # Output is already in double-row layout: row h, lane a*Wo*Cmid + (2w+b)*Cmid + co.
    up = jnp.dot(x_ref[0], wd_ref[...], preferred_element_type=jnp.float32) + bd_ref[...]

    # --- concat(up, r) along lanes (channel concat of the original module) -----------
    xc = jnp.concatenate([up, r_ref[0]], axis=-1)          # (H, 2*Wo*Cin)
    xcp[1:H + 1, :] = xc                                    # padded copy for +/-1 taps

    # --- shortcut: 1x1 conv over concat(up, r), K = 2*Wo*Cin --------------------------
    res = jnp.dot(xc, ws_ref[...], preferred_element_type=jnp.float32) + bsv

    # --- conv1 3x3 (+bias folded into BN shift) + bn1 + relu --------------------------
    # Vertical taps are 3 banded matmuls over slab rows h-1, h, h+1 (center from regs);
    # horizontal taps + horizontal SAME padding are folded into the band matrices.
    acc = jnp.dot(xc, w1_ref[1], preferred_element_type=jnp.float32)
    acc = acc + jnp.dot(xcp[0:H, :], w1_ref[0], preferred_element_type=jnp.float32)
    acc = acc + jnp.dot(xcp[2:H + 2, :], w1_ref[2], preferred_element_type=jnp.float32)
    o1 = jnp.maximum(acc * sc1 + sh1, 0.0)                  # (H, 2*Wo*Cout)

    # --- conv2 3x3 + bn2 + residual + relu --------------------------------------------
    o1p[1:H + 1, :] = o1
    acc2 = jnp.dot(o1, w2_ref[1], preferred_element_type=jnp.float32)
    acc2 = acc2 + jnp.dot(o1p[0:H, :], w2_ref[0], preferred_element_type=jnp.float32)
    acc2 = acc2 + jnp.dot(o1p[2:H + 2, :], w2_ref[2], preferred_element_type=jnp.float32)
    o_ref[0] = jnp.maximum(acc2 * sc2 + sh2 + res, 0.0).astype(o_ref.dtype)


# ----------------------------------------------------------------------------
# One-time weight preparation (hoisted out of the per-call forward).
# ----------------------------------------------------------------------------
def _band3x3_double(w_oihw, Wo):
    """(Cout, Cin, 3, 3) -> (3, 2*Wo*Cin, 2*Wo*Cout) band matrices for the double-row
    layout: out_slab[h] = sum_dv in_slab[h+dv] @ M[dv+1]."""
    w = w_oihw.astype(jnp.float32)
    Cout, Cin = w.shape[0], w.shape[1]
    dv = jnp.arange(3) - 1
    ky = (2 * dv[:, None, None] + jnp.arange(2)[None, :, None]
          - jnp.arange(2)[None, None, :] + 1)                      # (3, a_in, a_out)
    ind_v = (ky[..., None] == jnp.arange(3)).astype(jnp.float32)   # (3, 2, 2, 3)
    xi = jnp.arange(Wo)[:, None, None]                             # input col
    xo = jnp.arange(Wo)[None, :, None]                             # output col
    kx = jnp.arange(3)[None, None, :]
    ind_h = (xi == xo + kx - 1).astype(jnp.float32)                # (Wo, Wo, 3)
    m = jnp.einsum("vpqk,xyl,ockl->vpxcqyo", ind_v, ind_h, w)
    return m.reshape(3, 2 * Wo * Cin, 2 * Wo * Cout)


def _band1x1_double(w_oi, Wo):
    """(Cout, Cin) -> (2*Wo*Cin, 2*Wo*Cout) block-diagonal (1x1 conv) band matrix."""
    w = w_oi.astype(jnp.float32)
    m = jnp.einsum("pq,oc->pcqo", jnp.eye(2 * Wo, dtype=jnp.float32), w)
    return m.reshape(2 * Wo * w.shape[1], 2 * Wo * w.shape[0])


def bn_fold(gamma, beta, mean, var):
    scale = gamma / jnp.sqrt(var + EPS)
    shift = beta - mean * scale
    return scale, shift


def prepare_params(p, H, W):
    """Build MXU-shaped banded weights once (call outside the jitted forward)."""
    Cin = p["conv1_w"].shape[1]
    Cmid = Cin // 2
    Cout = p["conv1_w"].shape[0]
    Wo = 2 * W

    # Deconv weight (Cin, Cmid, 2, 2) -> (W*Cin, 2*Wo*Cmid) block matrix whose product
    # with an (H, W*Cin) slab yields the 2x-upsampled rows already interleaved.
    dw = p["deconv_w"].astype(jnp.float32)
    w_in = jnp.arange(W)[:, None, None]
    p_out = jnp.arange(Wo)[None, :, None]
    b_ = jnp.arange(2)[None, None, :]
    ind = (p_out == 2 * w_in + b_).astype(jnp.float32)             # (W, Wo, 2)
    wd = jnp.einsum("wpb,cdab->wcapd", ind, dw).reshape(W * Cin, 2 * Wo * Cmid)
    bd = jnp.tile(p["deconv_b"].astype(jnp.float32), 2 * Wo).reshape(1, 2 * Wo * Cmid)

    # conv1 split into up-half / r-half of the concat, stacked along K (K = 2*Wo*Cin).
    w1u = _band3x3_double(p["conv1_w"][:, :Cmid], Wo)
    w1r = _band3x3_double(p["conv1_w"][:, Cmid:], Wo)
    w1 = jnp.concatenate([w1u, w1r], axis=1)                       # (3, 2*Wo*Cin, 2*Wo*Cout)
    w2 = _band3x3_double(p["conv2_w"], Wo)                         # (3, 2*Wo*Cout, 2*Wo*Cout)
    wsu = _band1x1_double(p["short_w"][:, :Cmid, 0, 0], Wo)
    wsr = _band1x1_double(p["short_w"][:, Cmid:, 0, 0], Wo)
    ws = jnp.concatenate([wsu, wsr], axis=0)                       # (2*Wo*Cin, 2*Wo*Cout)

    # Eval-mode BN folded (conv biases folded into the BN shifts).
    s1, t1 = bn_fold(p["bn1_g"], p["bn1_b"], p["bn1_m"], p["bn1_v"])
    s2, t2 = bn_fold(p["bn2_g"], p["bn2_b"], p["bn2_m"], p["bn2_v"])
    sh1 = p["conv1_b"] * s1 + t1
    sh2 = p["conv2_b"] * s2 + t2
    ep = jnp.stack([jnp.tile(s1, 2 * Wo), jnp.tile(sh1, 2 * Wo),
                    jnp.tile(s2, 2 * Wo), jnp.tile(sh2, 2 * Wo),
                    jnp.tile(p["short_b"], 2 * Wo)]).astype(jnp.float32)

    return {"wd": wd, "bd": bd, "w1": w1, "w2": w2, "ws": ws, "ep": ep}


# ----------------------------------------------------------------------------
# Forward pass (NCHW in / NCHW out; layout converted only at the boundary).
# ----------------------------------------------------------------------------
def upsampling_resnet_forward(x, r, prep):
    N, Cin, H, W = x.shape
    Cmid = r.shape[1]
    Ho, Wo = r.shape[2], r.shape[3]
    Cout = prep["ep"].shape[1] // (2 * Wo)

    # Guard the lane-exact layout assumptions (fail loudly instead of silently misaligning).
    assert (W * Cin) % 128 == 0 and (2 * Wo * Cmid) % 128 == 0 and (2 * Wo * Cout) % 128 == 0, \
        "layout requires W*Cin, 2*Wo*Cmid and 2*Wo*Cout to be multiples of 128"

    # Boundary conversions: NCHW -> NHWC -> lane-merged double-row slabs (pure reshapes).
    x_slab = x.transpose(0, 2, 3, 1).reshape(N, H, W * Cin).astype(jnp.float32)
    r_slab = r.transpose(0, 2, 3, 1).reshape(N, H, 2 * Wo * Cmid).astype(jnp.float32)

    out = pl.pallas_call(
        _fused_kernel,
        out_shape=jax.ShapeDtypeStruct((N, H, 2 * Wo * Cout), jnp.float32),
        grid_spec=pltpu.PrefetchScalarGridSpec(
            num_scalar_prefetch=0,
            grid=(N,),
            in_specs=[
                pl.BlockSpec((1, H, W * Cin), lambda n: (n, 0, 0)),            # x
                pl.BlockSpec((1, H, 2 * Wo * Cmid), lambda n: (n, 0, 0)),      # r
                pl.BlockSpec((W * Cin, 2 * Wo * Cmid), lambda n: (0, 0)),      # deconv W
                pl.BlockSpec((3, 2 * Wo * Cin, 2 * Wo * Cout), lambda n: (0, 0, 0)),   # conv1 bands
                pl.BlockSpec((3, 2 * Wo * Cout, 2 * Wo * Cout), lambda n: (0, 0, 0)),  # conv2 bands
                pl.BlockSpec((2 * Wo * Cin, 2 * Wo * Cout), lambda n: (0, 0)),         # shortcut
                pl.BlockSpec((1, 2 * Wo * Cmid), lambda n: (0, 0)),            # deconv bias
                pl.BlockSpec((5, 2 * Wo * Cout), lambda n: (0, 0)),            # scales/shifts/bias
            ],
            out_specs=pl.BlockSpec((1, H, 2 * Wo * Cout), lambda n: (n, 0, 0)),
            scratch_shapes=[
                pltpu.VMEM((H + 2, 2 * Wo * Cin), jnp.float32),    # padded concat(up, r)
                pltpu.VMEM((H + 2, 2 * Wo * Cout), jnp.float32),   # padded conv1 output
            ],
        ),
        compiler_params=pltpu.CompilerParams(dimension_semantics=("parallel",)),
    )(x_slab, r_slab, prep["wd"], prep["w1"], prep["w2"], prep["ws"],
      prep["bd"], prep["ep"])

    # Double-row slab -> NHWC is a free reshape; only the final NCHW transpose costs anything.
    return out.reshape(N, Ho, Wo, Cout).transpose(0, 3, 1, 2)


# ----------------------------------------------------------------------------
# Pure-JAX reference (for verification)
# ----------------------------------------------------------------------------
def reference_forward(x, r, p):
    N, Cin, H, W = x.shape
    Cmid = Cin // 2
    up = jnp.einsum("ncij,cdab->ndiajb", x, p["deconv_w"]).reshape(
        N, Cmid, 2 * H, 2 * W) + p["deconv_b"][None, :, None, None]
    xc = jnp.concatenate([up, r], axis=1)

    def conv3x3(z, w, b):
        y = jax.lax.conv_general_dilated(
            z, w, (1, 1), "SAME", dimension_numbers=("NCHW", "OIHW", "NCHW"))
        return y + b[None, :, None, None]

    def bn(z, g, be, m, v):
        return (z - m[None, :, None, None]) / jnp.sqrt(
            v[None, :, None, None] + EPS) * g[None, :, None, None] + be[None, :, None, None]

    short = jnp.einsum("nchw,oc->nohw", xc,
                       p["short_w"][:, :, 0, 0]) + p["short_b"][None, :, None, None]
    o = jax.nn.relu(bn(conv3x3(xc, p["conv1_w"], p["conv1_b"]),
                       p["bn1_g"], p["bn1_b"], p["bn1_m"], p["bn1_v"]))
    o = bn(conv3x3(o, p["conv2_w"], p["conv2_b"]),
           p["bn2_g"], p["bn2_b"], p["bn2_m"], p["bn2_v"])
    return jax.nn.relu(o + short)


# ----------------------------------------------------------------------------
if __name__ == "__main__":
    key = jax.random.PRNGKey(0)
    N, Cin, H, W = 2, 8, 16, 16      # x: (2, 8, 16, 16)
    Cout = 4                         # UpSamplingResNet(in_channels=8, out_channels=4)
    Cmid = Cin // 2                  # r: (2, 4, 32, 32)

    ks = jax.random.split(key, 18)
    p = {
        "deconv_w": 0.1 * jax.random.normal(ks[0], (Cin, Cmid, 2, 2), jnp.float32),
        "deconv_b": 0.05 * jax.random.normal(ks[1], (Cmid,), jnp.float32),
        "conv1_w": 0.1 * jax.random.normal(ks[2], (Cout, Cin, 3, 3), jnp.float32),
        "conv1_b": 0.05 * jax.random.normal(ks[3], (Cout,), jnp.float32),
        "bn1_g": 1.0 + 0.1 * jax.random.normal(ks[4], (Cout,), jnp.float32),
        "bn1_b": 0.1 * jax.random.normal(ks[5], (Cout,), jnp.float32),
        "bn1_m": 0.05 * jax.random.normal(ks[6], (Cout,), jnp.float32),
        "bn1_v": 1.0 + 0.2 * jax.random.uniform(ks[7], (Cout,), jnp.float32),
        "conv2_w": 0.1 * jax.random.normal(ks[8], (Cout, Cout, 3, 3), jnp.float32),
        "conv2_b": 0.05 * jax.random.normal(ks[9], (Cout,), jnp.float32),
        "bn2_g": 1.0 + 0.1 * jax.random.normal(ks[10], (Cout,), jnp.float32),
        "bn2_b": 0.1 * jax.random.normal(ks[11], (Cout,), jnp.float32),
        "bn2_m": 0.05 * jax.random.normal(ks[12], (Cout,), jnp.float32),
        "bn2_v": 1.0 + 0.2 * jax.random.uniform(ks[13], (Cout,), jnp.float32),
        "short_w": 0.1 * jax.random.normal(ks[14], (Cout, Cin, 1, 1), jnp.float32),
        "short_b": 0.05 * jax.random.normal(ks[15], (Cout,), jnp.float32),
    }
    x = jax.random.normal(ks[16], (N, Cin, H, W), jnp.float32)
    r = jax.random.normal(ks[17], (N, Cmid, 2 * H, 2 * W), jnp.float32)

    # One-time weight prep, hoisted out of the per-call forward.
    prep = jax.tree_util.tree_map(jax.block_until_ready, prepare_params(p, H, W))

    forward = jax.jit(upsampling_resnet_forward)
    out = jax.block_until_ready(forward(x, r, prep))
    ref = jax.block_until_ready(reference_forward(x, r, p))

    assert out.shape == (N, Cout, 2 * H, 2 * W), out.shape
    assert jnp.allclose(out, ref, atol=1e-4, rtol=1e-4), float(
        jnp.max(jnp.abs(out - ref)))
    print("KERNEL_OK")
</pallas_src>

<mosaic_0001>
module attributes {stable_mosaic.version = 11 : i64} {
  func.func @_fused_kernel(%arg0: i32, %arg1: memref<1x16x128xf32, #tpu.memory_space<vmem>>, %arg2: memref<1x16x256xf32, #tpu.memory_space<vmem>>, %arg3: memref<128x256xf32, #tpu.memory_space<vmem>>, %arg4: memref<3x512x256xf32, #tpu.memory_space<vmem>>, %arg5: memref<3x256x256xf32, #tpu.memory_space<vmem>>, %arg6: memref<512x256xf32, #tpu.memory_space<vmem>>, %arg7: memref<1x256xf32, #tpu.memory_space<vmem>>, %arg8: memref<5x256xf32, #tpu.memory_space<vmem>>, %arg9: memref<1x16x256xf32, #tpu.memory_space<vmem>>, %arg10: memref<18x512xf32, #tpu.memory_space<vmem>>, %arg11: memref<18x256xf32, #tpu.memory_space<vmem>>) attributes {dimension_semantics = [#tpu.dimension_semantics<parallel>], iteration_bounds = array<i64: 2>, scalar_prefetch = 0 : i64, scratch_operands = 2 : i64, tpu.core_type = #tpu.core_type<tc>, window_params = [{transform_indices = @transform_0, window_bounds = array<i64: 1, 16, 128>}, {transform_indices = @transform_1, window_bounds = array<i64: 1, 16, 256>}, {pipeline_mode = #tpu.pipeline_mode<synchronous>, transform_indices = @transform_2, window_bounds = array<i64: 128, 256>}, {pipeline_mode = #tpu.pipeline_mode<synchronous>, transform_indices = @transform_3, window_bounds = array<i64: 3, 512, 256>}, {pipeline_mode = #tpu.pipeline_mode<synchronous>, transform_indices = @transform_4, window_bounds = array<i64: 3, 256, 256>}, {pipeline_mode = #tpu.pipeline_mode<synchronous>, transform_indices = @transform_5, window_bounds = array<i64: 512, 256>}, {pipeline_mode = #tpu.pipeline_mode<synchronous>, transform_indices = @transform_6, window_bounds = array<i64: 1, 256>}, {pipeline_mode = #tpu.pipeline_mode<synchronous>, transform_indices = @transform_7, window_bounds = array<i64: 5, 256>}, {transform_indices = @transform_8, window_bounds = array<i64: 1, 16, 256>}]} {
    %c0 = arith.constant 0 : index
    %c0_0 = arith.constant 0 : index
    %0 = vector.load %arg8[%c0, %c0_0] : memref<5x256xf32, #tpu.memory_space<vmem>>, vector<5x256xf32>
    %1 = vector.extract_strided_slice %0 {offsets = [0, 0], sizes = [1, 256], strides = [1, 1]} : vector<5x256xf32> to vector<1x256xf32>
    %2 = vector.extract_strided_slice %0 {offsets = [1, 0], sizes = [1, 256], strides = [1, 1]} : vector<5x256xf32> to vector<1x256xf32>
    %3 = vector.extract_strided_slice %0 {offsets = [2, 0], sizes = [1, 256], strides = [1, 1]} : vector<5x256xf32> to vector<1x256xf32>
    %4 = vector.extract_strided_slice %0 {offsets = [3, 0], sizes = [1, 256], strides = [1, 1]} : vector<5x256xf32> to vector<1x256xf32>
    %5 = vector.extract_strided_slice %0 {offsets = [4, 0], sizes = [1, 256], strides = [1, 1]} : vector<5x256xf32> to vector<1x256xf32>
    %cst = arith.constant 0.000000e+00 : f32
    %6 = vector.broadcast %cst : f32 to vector<1x512xf32>
    %cst_1 = arith.constant 0.000000e+00 : f32
    %7 = vector.broadcast %cst_1 : f32 to vector<1x256xf32>
    %c0_2 = arith.constant 0 : index
    %c0_3 = arith.constant 0 : index
    %8 = vector.load %arg10[%c0_2, %c0_3] : memref<18x512xf32, #tpu.memory_space<vmem>>, vector<1x512xf32>
    tpu.vector_store %arg10[%c0_2, %c0_3], %6 {strides = array<i32>} : memref<18x512xf32, #tpu.memory_space<vmem>>, vector<1x512xf32>,
    %c17 = arith.constant 17 : index
    %c0_4 = arith.constant 0 : index
    %9 = vector.load %arg10[%c17, %c0_4] : memref<18x512xf32, #tpu.memory_space<vmem>>, vector<1x512xf32>
    tpu.vector_store %arg10[%c17, %c0_4], %6 {strides = array<i32>} : memref<18x512xf32, #tpu.memory_space<vmem>>, vector<1x512xf32>,
    %c0_5 = arith.constant 0 : index
    %c0_6 = arith.constant 0 : index
    %10 = vector.load %arg11[%c0_5, %c0_6] : memref<18x256xf32, #tpu.memory_space<vmem>>, vector<1x256xf32>
    tpu.vector_store %arg11[%c0_5, %c0_6], %7 {strides = array<i32>} : memref<18x256xf32, #tpu.memory_space<vmem>>, vector<1x256xf32>,
    %c17_7 = arith.constant 17 : index
    %c0_8 = arith.constant 0 : index
    %11 = vector.load %arg11[%c17_7, %c0_8] : memref<18x256xf32, #tpu.memory_space<vmem>>, vector<1x256xf32>
    tpu.vector_store %arg11[%c17_7, %c0_8], %7 {strides = array<i32>} : memref<18x256xf32, #tpu.memory_space<vmem>>, vector<1x256xf32>,
    %c0_9 = arith.constant 0 : index
    %c0_10 = arith.constant 0 : index
    %c0_11 = arith.constant 0 : index
    %12 = vector.load %arg1[%c0_9, %c0_10, %c0_11] : memref<1x16x128xf32, #tpu.memory_space<vmem>>, vector<1x16x128xf32>
    %13 = vector.shape_cast %12 : vector<1x16x128xf32> to vector<16x128xf32>
    %c0_12 = arith.constant 0 : index
    %c0_13 = arith.constant 0 : index
    %14 = vector.load %arg3[%c0_12, %c0_13] : memref<128x256xf32, #tpu.memory_space<vmem>>, vector<128x256xf32>
    %cst_14 = arith.constant dense<0.000000e+00> : vector<16x256xf32>
    %15 = tpu.matmul %13, %14, %cst_14 {dimension_numbers = #tpu.dot_dimension_numbers<[1], [0], [0], [1], [0, 0, 1, 1], [], []>} : vector<16x128xf32>, vector<128x256xf32>, vector<16x256xf32> -> vector<16x256xf32>
    %c0_15 = arith.constant 0 : index
    %c0_16 = arith.constant 0 : index
    %16 = vector.load %arg7[%c0_15, %c0_16] : memref<1x256xf32, #tpu.memory_space<vmem>>, vector<1x256xf32>
    %17 = vector.broadcast %16 : vector<1x256xf32> to vector<16x256xf32>
    %18 = arith.addf %15, %17 : vector<16x256xf32>
    %c0_17 = arith.constant 0 : index
    %c0_18 = arith.constant 0 : index
    %c0_19 = arith.constant 0 : index
    %19 = vector.load %arg2[%c0_17, %c0_18, %c0_19] : memref<1x16x256xf32, #tpu.memory_space<vmem>>, vector<1x16x256xf32>
    %20 = vector.shape_cast %19 : vector<1x16x256xf32> to vector<16x256xf32>
    %21 = tpu.concatenate %18, %20 in 1 : vector<16x256xf32>, vector<16x256xf32> -> vector<16x512xf32>
    %c1 = arith.constant 1 : index
    %c0_20 = arith.constant 0 : index
    %22 = vector.load %arg10[%c1, %c0_20] : memref<18x512xf32, #tpu.memory_space<vmem>>, vector<16x512xf32>
    tpu.vector_store %arg10[%c1, %c0_20], %21 {strides = array<i32>} : memref<18x512xf32, #tpu.memory_space<vmem>>, vector<16x512xf32>,
    %c0_21 = arith.constant 0 : index
    %c0_22 = arith.constant 0 : index
    %23 = vector.load %arg6[%c0_21, %c0_22] : memref<512x256xf32, #tpu.memory_space<vmem>>, vector<512x256xf32>
    %cst_23 = arith.constant dense<0.000000e+00> : vector<16x256xf32>
    %24 = tpu.matmul %21, %23, %cst_23 {dimension_numbers = #tpu.dot_dimension_numbers<[1], [0], [0], [1], [0, 0, 1, 1], [], []>} : vector<16x512xf32>, vector<512x256xf32>, vector<16x256xf32> -> vector<16x256xf32>
    %25 = vector.broadcast %5 : vector<1x256xf32> to vector<16x256xf32>
    %26 = arith.addf %24, %25 : vector<16x256xf32>
    %c1_24 = arith.constant 1 : index
    %c0_25 = arith.constant 0 : index
    %c0_26 = arith.constant 0 : index
    %27 = vector.load %arg4[%c1_24, %c0_25, %c0_26] : memref<3x512x256xf32, #tpu.memory_space<vmem>>, vector<1x512x256xf32>
    %28 = vector.shape_cast %27 : vector<1x512x256xf32> to vector<512x256xf32>
    %cst_27 = arith.constant dense<0.000000e+00> : vector<16x256xf32>
    %29 = tpu.matmul %21, %28, %cst_27 {dimension_numbers = #tpu.dot_dimension_numbers<[1], [0], [0], [1], [0, 0, 1, 1], [], []>} : vector<16x512xf32>, vector<512x256xf32>, vector<16x256xf32> -> vector<16x256xf32>
    %c0_28 = arith.constant 0 : index
    %c0_29 = arith.constant 0 : index
    %30 = vector.load %arg10[%c0_28, %c0_29] : memref<18x512xf32, #tpu.memory_space<vmem>>, vector<16x512xf32>
    %c0_30 = arith.constant 0 : index
    %c0_31 = arith.constant 0 : index
    %c0_32 = arith.constant 0 : index
    %31 = vector.load %arg4[%c0_30, %c0_31, %c0_32] : memref<3x512x256xf32, #tpu.memory_space<vmem>>, vector<1x512x256xf32>
    %32 = vector.shape_cast %31 : vector<1x512x256xf32> to vector<512x256xf32>
    %cst_33 = arith.constant dense<0.000000e+00> : vector<16x256xf32>
    %33 = tpu.matmul %30, %32, %cst_33 {dimension_numbers = #tpu.dot_dimension_numbers<[1], [0], [0], [1], [0, 0, 1, 1], [], []>} : vector<16x512xf32>, vector<512x256xf32>, vector<16x256xf32> -> vector<16x256xf32>
    %34 = arith.addf %29, %33 : vector<16x256xf32>
    %c2 = arith.constant 2 : index
    %c0_34 = arith.constant 0 : index
    %35 = vector.load %arg10[%c2, %c0_34] : memref<18x512xf32, #tpu.memory_space<vmem>>, vector<16x512xf32>
    %c2_35 = arith.constant 2 : index
    %c0_36 = arith.constant 0 : index
    %c0_37 = arith.constant 0 : index
    %36 = vector.load %arg4[%c2_35, %c0_36, %c0_37] : memref<3x512x256xf32, #tpu.memory_space<vmem>>, vector<1x512x256xf32>
    %37 = vector.shape_cast %36 : vector<1x512x256xf32> to vector<512x256xf32>
    %cst_38 = arith.constant dense<0.000000e+00> : vector<16x256xf32>
    %38 = tpu.matmul %35, %37, %cst_38 {dimension_numbers = #tpu.dot_dimension_numbers<[1], [0], [0], [1], [0, 0, 1, 1], [], []>} : vector<16x512xf32>, vector<512x256xf32>, vector<16x256xf32> -> vector<16x256xf32>
    %39 = arith.addf %34, %38 : vector<16x256xf32>
    %40 = vector.broadcast %1 : vector<1x256xf32> to vector<16x256xf32>
    %41 = arith.mulf %39, %40 : vector<16x256xf32>
    %42 = vector.broadcast %2 : vector<1x256xf32> to vector<16x256xf32>
    %43 = arith.addf %41, %42 : vector<16x256xf32>
    %cst_39 = arith.constant 0.000000e+00 : f32
    %44 = vector.broadcast %cst_39 : f32 to vector<16x256xf32>
    %45 = arith.maximumf %43, %44 : vector<16x256xf32>
    %c1_40 = arith.constant 1 : index
    %c0_41 = arith.constant 0 : index
    %46 = vector.load %arg11[%c1_40, %c0_41] : memref<18x256xf32, #tpu.memory_space<vmem>>, vector<16x256xf32>
    tpu.vector_store %arg11[%c1_40, %c0_41], %45 {strides = array<i32>} : memref<18x256xf32, #tpu.memory_space<vmem>>, vector<16x256xf32>,
    %c1_42 = arith.constant 1 : index
    %c0_43 = arith.constant 0 : index
    %c0_44 = arith.constant 0 : index
    %47 = vector.load %arg5[%c1_42, %c0_43, %c0_44] : memref<3x256x256xf32, #tpu.memory_space<vmem>>, vector<1x256x256xf32>
    %48 = vector.shape_cast %47 : vector<1x256x256xf32> to vector<256x256xf32>
    %cst_45 = arith.constant dense<0.000000e+00> : vector<16x256xf32>
    %49 = tpu.matmul %45, %48, %cst_45 {dimension_numbers = #tpu.dot_dimension_numbers<[1], [0], [0], [1], [0, 0, 1, 1], [], []>} : vector<16x256xf32>, vector<256x256xf32>, vector<16x256xf32> -> vector<16x256xf32>
    %c0_46 = arith.constant 0 : index
    %c0_47 = arith.constant 0 : index
    %50 = vector.load %arg11[%c0_46, %c0_47] : memref<18x256xf32, #tpu.memory_space<vmem>>, vector<16x256xf32>
    %c0_48 = arith.constant 0 : index
    %c0_49 = arith.constant 0 : index
    %c0_50 = arith.constant 0 : index
    %51 = vector.load %arg5[%c0_48, %c0_49, %c0_50] : memref<3x256x256xf32, #tpu.memory_space<vmem>>, vector<1x256x256xf32>
    %52 = vector.shape_cast %51 : vector<1x256x256xf32> to vector<256x256xf32>
    %cst_51 = arith.constant dense<0.000000e+00> : vector<16x256xf32>
    %53 = tpu.matmul %50, %52, %cst_51 {dimension_numbers = #tpu.dot_dimension_numbers<[1], [0], [0], [1], [0, 0, 1, 1], [], []>} : vector<16x256xf32>, vector<256x256xf32>, vector<16x256xf32> -> vector<16x256xf32>
    %54 = arith.addf %49, %53 : vector<16x256xf32>
    %c2_52 = arith.constant 2 : index
    %c0_53 = arith.constant 0 : index
    %55 = vector.load %arg11[%c2_52, %c0_53] : memref<18x256xf32, #tpu.memory_space<vmem>>, vector<16x256xf32>
    %c2_54 = arith.constant 2 : index
    %c0_55 = arith.constant 0 : index
    %c0_56 = arith.constant 0 : index
    %56 = vector.load %arg5[%c2_54, %c0_55, %c0_56] : memref<3x256x256xf32, #tpu.memory_space<vmem>>, vector<1x256x256xf32>
    %57 = vector.shape_cast %56 : vector<1x256x256xf32> to vector<256x256xf32>
    %cst_57 = arith.constant dense<0.000000e+00> : vector<16x256xf32>
    %58 = tpu.matmul %55, %57, %cst_57 {dimension_numbers = #tpu.dot_dimension_numbers<[1], [0], [0], [1], [0, 0, 1, 1], [], []>} : vector<16x256xf32>, vector<256x256xf32>, vector<16x256xf32> -> vector<16x256xf32>
    %59 = arith.addf %54, %58 : vector<16x256xf32>
    %60 = vector.broadcast %3 : vector<1x256xf32> to vector<16x256xf32>
    %61 = arith.mulf %59, %60 : vector<16x256xf32>
    %62 = vector.broadcast %4 : vector<1x256xf32> to vector<16x256xf32>
    %63 = arith.addf %61, %62 : vector<16x256xf32>
    %64 = arith.addf %63, %26 : vector<16x256xf32>
    %cst_58 = arith.constant 0.000000e+00 : f32
    %65 = vector.broadcast %cst_58 : f32 to vector<16x256xf32>
    %66 = arith.maximumf %64, %65 : vector<16x256xf32>
    %c0_59 = arith.constant 0 : index
    %c0_60 = arith.constant 0 : index
    %c0_61 = arith.constant 0 : index
    %67 = vector.load %arg9[%c0_59, %c0_60, %c0_61] : memref<1x16x256xf32, #tpu.memory_space<vmem>>, vector<1x16x256xf32>
    %68 = vector.shape_cast %67 : vector<1x16x256xf32> to vector<16x256xf32>
    %69 = vector.shape_cast %66 : vector<16x256xf32> to vector<1x16x256xf32>
    tpu.vector_store %arg9[%c0_59, %c0_60, %c0_61], %69 {strides = array<i32>} : memref<1x16x256xf32, #tpu.memory_space<vmem>>, vector<1x16x256xf32>,
    return
  }
  func.func @transform_0(%arg0: i32) -> (i32, i32, i32) {
    %c0_i32 = arith.constant 0 : i32
    %c0_i32_0 = arith.constant 0 : i32
    %c0_i32_1 = arith.constant 0 : i32
    return %arg0, %c0_i32, %c0_i32_0 : i32, i32, i32
  }
  func.func @transform_1(%arg0: i32) -> (i32, i32, i32) {
    %c0_i32 = arith.constant 0 : i32
    %c0_i32_0 = arith.constant 0 : i32
    %c0_i32_1 = arith.constant 0 : i32
    return %arg0, %c0_i32, %c0_i32_0 : i32, i32, i32
  }
  func.func @transform_2(%arg0: i32) -> (i32, i32) {
    %c0_i32 = arith.constant 0 : i32
    %c0_i32_0 = arith.constant 0 : i32
    %c0_i32_1 = arith.constant 0 : i32
    return %c0_i32, %c0_i32_0 : i32, i32
  }
  func.func @transform_3(%arg0: i32) -> (i32, i32, i32) {
    %c0_i32 = arith.constant 0 : i32
    %c0_i32_0 = arith.constant 0 : i32
    %c0_i32_1 = arith.constant 0 : i32
    %c0_i32_2 = arith.constant 0 : i32
    return %c0_i32, %c0_i32_0, %c0_i32_1 : i32, i32, i32
  }
  func.func @transform_4(%arg0: i32) -> (i32, i32, i32) {
    %c0_i32 = arith.constant 0 : i32
    %c0_i32_0 = arith.constant 0 : i32
    %c0_i32_1 = arith.constant 0 : i32
    %c0_i32_2 = arith.constant 0 : i32
    return %c0_i32, %c0_i32_0, %c0_i32_1 : i32, i32, i32
  }
  func.func @transform_5(%arg0: i32) -> (i32, i32) {
    %c0_i32 = arith.constant 0 : i32
    %c0_i32_0 = arith.constant 0 : i32
    %c0_i32_1 = arith.constant 0 : i32
    return %c0_i32, %c0_i32_0 : i32, i32
  }
  func.func @transform_6(%arg0: i32) -> (i32, i32) {
    %c0_i32 = arith.constant 0 : i32
    %c0_i32_0 = arith.constant 0 : i32
    %c0_i32_1 = arith.constant 0 : i32
    return %c0_i32, %c0_i32_0 : i32, i32
  }
  func.func @transform_7(%arg0: i32) -> (i32, i32) {
    %c0_i32 = arith.constant 0 : i32
    %c0_i32_0 = arith.constant 0 : i32
    %c0_i32_1 = arith.constant 0 : i32
    return %c0_i32, %c0_i32_0 : i32, i32
  }
  func.func @transform_8(%arg0: i32) -> (i32, i32, i32) {
    %c0_i32 = arith.constant 0 : i32
    %c0_i32_0 = arith.constant 0 : i32
    %c0_i32_1 = arith.constant 0 : i32
    return %arg0, %c0_i32, %c0_i32_0 : i32, i32, i32
  }
}

</mosaic_0001>

<llo_original>
// kernel: upsampling_resnet_forward.1
$region0: #{upsampling_resnet_forward.1}
  #allocation0 [shape = 'u32[]', space=smem, size = 0x4, offset = 0x4, fixed_abs, tag = 'smem constant byte address 0x4 - core index']
  #allocation1 [shape = 'u32[72,128]{1,0:T(1,128)}', space=vmem, size = 0x9000, scoped, tag = 'internal scratch']
  #allocation2 [shape = 'f32[18,512]{1,0:T(8,128)}', space=vmem, size = 0xc000, scoped, tag = 'scratch operand']
  #allocation3 [shape = 'f32[18,256]{1,0:T(8,128)}', space=vmem, size = 0x6000, scoped, tag = 'scratch operand']
  %s0 = inlined_call_operand.vmem [shape: f32[2,16,128], index: 0, kind: input, shape index: {}]
  %s1 = inlined_call_operand.vmem [shape: f32[2,16,256], index: 1, kind: input, shape index: {}]
  %s2 = inlined_call_operand.vmem [shape: f32[128,256], index: 2, kind: input, shape index: {}]
  %s3 = inlined_call_operand.vmem [shape: f32[3,512,256], index: 3, kind: input, shape index: {}]
  %s4 = inlined_call_operand.vmem [shape: f32[3,256,256], index: 4, kind: input, shape index: {}]
  %s5 = inlined_call_operand.hbm [shape: f32[512,256], index: 5, kind: input, shape index: {}]
  %s6 = inlined_call_operand.vmem [shape: f32[1,256], index: 6, kind: input, shape index: {}]
  %s7 = inlined_call_operand.vmem [shape: f32[5,256], index: 7, kind: input, shape index: {}]
  %s8 = inlined_call_operand.vmem [shape: f32[2,16,256], index: 8, kind: output, shape index: {}]
  %s9 = sld [smem:[#allocation0]]
  $region69: #{upsampling_resnet_forward.1} parent=0
    _
  %s11 = ssub.s32 1, %s9
  %s12 = scalar_select 0, %s11, %s9
  $region1: #{upsampling_resnet_forward.1} parent=0
    #allocation4 [shape = 'u8[524288]{0}', space=vmem, size = 0x80000, scoped, tag = 'input window, operand 5, single buffered']
    #allocation5 [shape = 's32[2]{0}', space=sflag, size = 0x8, scoped, tag = 'scoped memory for upsampling_resnet_forward.1']
    %13 = vsyncpa [#allocation5], 0
    loop: start=0, step=1, limit=4
    $region2: #{upsampling_resnet_forward.1} parent=1 // loop_pre_header
      _
    $region3: #{upsampling_resnet_forward.1} parent=1 // loop_header
      %s15 = sphi 0, %s19
      %p16 = scmp.ge.s32.totalorder %s15, 4
      %s25 = sphi 0, %s27
      %s28 = sphi 0, %s25
      %s29 = sphi 0, %s28
      %s45 = sphi 0, %s29
      %s51 = sphi 0, %s53
      %s54 = sphi 0, %s51
      %s55 = sphi 0, %s54
      %s71 = sphi 0, %s55
      %s75 = sphi 0, %s75
      %s77 = sphi 0, %s75
      %s78 = sphi 0, %s77
      %s92 = sphi 0, %s78
      %s96 = sphi 0, %s96
      %s98 = sphi 0, %s96
      %s99 = sphi 0, %s98
      %s113 = sphi 0, %s99
      %s117 = sphi 0, %s117
      %s119 = sphi 0, %s117
      %s120 = sphi 0, %s119
      %s134 = sphi 0, %s120
      %s138 = sphi 0, %s138
      %s140 = sphi 0, %s138
      %s141 = sphi 0, %s140
      %s155 = sphi 0, %s141
      %s159 = sphi 0, %s159
      %s161 = sphi 0, %s159
      %s162 = sphi 0, %s161
      %s176 = sphi 0, %s162
      %s180 = sphi 0, %s180
      %s182 = sphi 0, %s180
      %s183 = sphi 0, %s182
      %s197 = sphi 0, %s183
      %s203 = sphi 0, %s205
      %s206 = sphi 0, %s203
      %s207 = sphi 0, %s206
      %s223 = sphi 0, %s207
    $region4: #{upsampling_resnet_forward.1} parent=1 // loop_header_branch
      %18 = sbr.rel (%p16) target = $region8
    $region5: #{upsampling_resnet_forward.1} parent=1 // loop_body
      %s20 = ssub.s32 %s15, 1
      %s21 = ssub.s32 %s15, 2
      %s22 = sadd.s32 %s15, 1
      %s23 = ssub.s32 %s15, %s22
      %p24 = scmp.eq.s32.totalorder %s23, 0
      %s26 = sadd.s32 %s25, 1
      %s27 = scalar_select %p24, %s25, %s26
      %p30 = pneg %p24
      %p31 = scmp.eq.s32.totalorder %s15, 1
      %p32 = por %p30, %p31
      %p33 = scmp.ne.s32.totalorder %s25, %s28
      %p34 = scmp.eq.s32.totalorder %s15, 0
      %p35 = por %p33, %p34
      %p36 = scmp.ne.s32.totalorder %s25, %s28
      %p37 = scmp.eq.s32.totalorder %s20, 1
      %p38 = por %p36, %p37
      %p39 = scmp.ne.s32.totalorder %s28, %s29
      %p40 = scmp.eq.s32.totalorder %s20, 0
      %p41 = por %p39, %p40
      %p42 = scmp.ne.s32.totalorder %s28, %s29
      %p43 = scmp.eq.s32.totalorder %s21, 1
      %p44 = por %p42, %p43
      %p46 = scmp.ne.s32.totalorder %s29, %s45
      %p47 = scmp.eq.s32.totalorder %s21, 0
      %p48 = por %p46, %p47
      %s49 = ssub.s32 %s15, %s22
      %p50 = scmp.eq.s32.totalorder %s49, 0
      %s52 = sadd.s32 %s51, 1
      %s53 = scalar_select %p50, %s51, %s52
      %p56 = pneg %p50
      %p57 = scmp.eq.s32.totalorder %s15, 1
      %p58 = por %p56, %p57
      %p59 = scmp.ne.s32.totalorder %s51, %s54
      %p60 = scmp.eq.s32.totalorder %s15, 0
      %p61 = por %p59, %p60
      %p62 = scmp.ne.s32.totalorder %s51, %s54
      %p63 = scmp.eq.s32.totalorder %s20, 1
      %p64 = por %p62, %p63
      %p65 = scmp.ne.s32.totalorder %s54, %s55
      %p66 = scmp.eq.s32.totalorder %s20, 0
      %p67 = por %p65, %p66
      %p68 = scmp.ne.s32.totalorder %s54, %s55
      %p69 = scmp.eq.s32.totalorder %s21, 1
      %p70 = por %p68, %p69
      %p72 = scmp.ne.s32.totalorder %s55, %s71
      %p73 = scmp.eq.s32.totalorder %s21, 0
      %p74 = por %p72, %p73
      %s76 = sadd.s32 %s75, 1
      %p79 = scmp.eq.s32.totalorder %s15, 1
      %p80 = scmp.ne.s32.totalorder %s75, %s77
      %p81 = scmp.eq.s32.totalorder %s15, 0
      %p82 = por %p80, %p81
      %p83 = scmp.ne.s32.totalorder %s75, %s77
      %p84 = scmp.eq.s32.totalorder %s20, 1
      %p85 = por %p83, %p84
      %p86 = scmp.ne.s32.totalorder %s77, %s78
      %p87 = scmp.eq.s32.totalorder %s20, 0
      %p88 = por %p86, %p87
      %p89 = scmp.ne.s32.totalorder %s77, %s78
      %p90 = scmp.eq.s32.totalorder %s21, 1
      %p91 = por %p89, %p90
      %p93 = scmp.ne.s32.totalorder %s78, %s92
      %p94 = scmp.eq.s32.totalorder %s21, 0
      %p95 = por %p93, %p94
      %s97 = sadd.s32 %s96, 1
      %p100 = scmp.eq.s32.totalorder %s15, 1
      %p101 = scmp.ne.s32.totalorder %s96, %s98
      %p102 = scmp.eq.s32.totalorder %s15, 0
      %p103 = por %p101, %p102
      %p104 = scmp.ne.s32.totalorder %s96, %s98
      %p105 = scmp.eq.s32.totalorder %s20, 1
      %p106 = por %p104, %p105
      %p107 = scmp.ne.s32.totalorder %s98, %s99
      %p108 = scmp.eq.s32.totalorder %s20, 0
      %p109 = por %p107, %p108
      %p110 = scmp.ne.s32.totalorder %s98, %s99
      %p111 = scmp.eq.s32.totalorder %s21, 1
      %p112 = por %p110, %p111
      %p114 = scmp.ne.s32.totalorder %s99, %s113
      %p115 = scmp.eq.s32.totalorder %s21, 0
      %p116 = por %p114, %p115
      %s118 = sadd.s32 %s117, 1
      %p121 = scmp.eq.s32.totalorder %s15, 1
      %p122 = scmp.ne.s32.totalorder %s117, %s119
      %p123 = scmp.eq.s32.totalorder %s15, 0
      %p124 = por %p122, %p123
      %p125 = scmp.ne.s32.totalorder %s117, %s119
      %p126 = scmp.eq.s32.totalorder %s20, 1
      %p127 = por %p125, %p126
      %p128 = scmp.ne.s32.totalorder %s119, %s120
      %p129 = scmp.eq.s32.totalorder %s20, 0
      %p130 = por %p128, %p129
      %p131 = scmp.ne.s32.totalorder %s119, %s120
      %p132 = scmp.eq.s32.totalorder %s21, 1
      %p133 = por %p131, %p132
      %p135 = scmp.ne.s32.totalorder %s120, %s134
      %p136 = scmp.eq.s32.totalorder %s21, 0
      %p137 = por %p135, %p136
      %s139 = sadd.s32 %s138, 1
      %p142 = scmp.eq.s32.totalorder %s15, 1
      %p143 = scmp.ne.s32.totalorder %s138, %s140
      %p144 = scmp.eq.s32.totalorder %s15, 0
      %p145 = por %p143, %p144
      %p146 = scmp.ne.s32.totalorder %s138, %s140
      %p147 = scmp.eq.s32.totalorder %s20, 1
      %p148 = por %p146, %p147
      %p149 = scmp.ne.s32.totalorder %s140, %s141
      %p150 = scmp.eq.s32.totalorder %s20, 0
      %p151 = por %p149, %p150
      %p152 = scmp.ne.s32.totalorder %s140, %s141
      %p153 = scmp.eq.s32.totalorder %s21, 1
      %p154 = por %p152, %p153
      %p156 = scmp.ne.s32.totalorder %s141, %s155
      %p157 = scmp.eq.s32.totalorder %s21, 0
      %p158 = por %p156, %p157
      %s160 = sadd.s32 %s159, 1
      %p163 = scmp.eq.s32.totalorder %s15, 1
      %p164 = scmp.ne.s32.totalorder %s159, %s161
      %p165 = scmp.eq.s32.totalorder %s15, 0
      %p166 = por %p164, %p165
      %p167 = scmp.ne.s32.totalorder %s159, %s161
      %p168 = scmp.eq.s32.totalorder %s20, 1
      %p169 = por %p167, %p168
      %p170 = scmp.ne.s32.totalorder %s161, %s162
      %p171 = scmp.eq.s32.totalorder %s20, 0
      %p172 = por %p170, %p171
      %p173 = scmp.ne.s32.totalorder %s161, %s162
      %p174 = scmp.eq.s32.totalorder %s21, 1
      %p175 = por %p173, %p174
      %p177 = scmp.ne.s32.totalorder %s162, %s176
      %p178 = scmp.eq.s32.totalorder %s21, 0
      %p179 = por %p177, %p178
      %s181 = sadd.s32 %s180, 1
      %p184 = scmp.eq.s32.totalorder %s15, 1
      %p185 = scmp.ne.s32.totalorder %s180, %s182
      %p186 = scmp.eq.s32.totalorder %s15, 0
      %p187 = por %p185, %p186
      %p188 = scmp.ne.s32.totalorder %s180, %s182
      %p189 = scmp.eq.s32.totalorder %s20, 1
      %p190 = por %p188, %p189
      %p191 = scmp.ne.s32.totalorder %s182, %s183
      %p192 = scmp.eq.s32.totalorder %s20, 0
      %p193 = por %p191, %p192
      %p194 = scmp.ne.s32.totalorder %s182, %s183
      %p195 = scmp.eq.s32.totalorder %s21, 1
      %p196 = por %p194, %p195
      %p198 = scmp.ne.s32.totalorder %s183, %s197
      %p199 = scmp.eq.s32.totalorder %s21, 0
      %p200 = por %p198, %p199
      %s201 = ssub.s32 %s15, %s22
      %p202 = scmp.eq.s32.totalorder %s201, 0
      %s204 = sadd.s32 %s203, 1
      %s205 = scalar_select %p202, %s203, %s204
      %p208 = pneg %p202
      %p209 = scmp.eq.s32.totalorder %s15, 1
      %p210 = por %p208, %p209
      %p211 = scmp.ne.s32.totalorder %s203, %s206
      %p212 = scmp.eq.s32.totalorder %s15, 0
      %p213 = por %p211, %p212
      %p214 = scmp.ne.s32.totalorder %s203, %s206
      %p215 = scmp.eq.s32.totalorder %s20, 1
      %p216 = por %p214, %p215
      %p217 = scmp.ne.s32.totalorder %s206, %s207
      %p218 = scmp.eq.s32.totalorder %s20, 0
      %p219 = por %p217, %p218
      %p220 = scmp.ne.s32.totalorder %s206, %s207
      %p221 = scmp.eq.s32.totalorder %s21, 1
      %p222 = por %p220, %p221
      %p224 = scmp.ne.s32.totalorder %s207, %s223
      %p225 = scmp.eq.s32.totalorder %s21, 0
      %p226 = por %p224, %p225
      %p227 = scmp.le.s32.totalorder 1, %s15
      %p228 = scmp.lt.s32.totalorder %s15, 3
      %p229 = pnand %p227, %p228
      %p230 = pneg %p229
      // Predicated region
      $region9: #{upsampling_resnet_forward.1} parent=5 // pred_check
        _
      $region10: #{upsampling_resnet_forward.1} parent=5 // pred_check_branch
        %232 = sbr.rel (%p229) target = $region12
      $region11: #{upsampling_resnet_forward.1} parent=5 // pred_region
        %s233 = ssub.s32 %s15, 1
        // Predicated region
        $region13: #{upsampling_resnet_forward.1} parent=11 // pred_check
          %p234 = pneg %p88
        $region14: #{upsampling_resnet_forward.1} parent=11 // pred_check_branch
          %236 = sbr.rel (%p234) target = $region16
        $region15: #{upsampling_resnet_forward.1} parent=11 // pred_region
          _
        $region16: #{upsampling_resnet_forward.1} parent=11 // pred_fallthru
          _
        // Predicated region
        $region17: #{upsampling_resnet_forward.1} parent=11 // pred_check
          %p237 = pneg %p109
        $region18: #{upsampling_resnet_forward.1} parent=11 // pred_check_branch
          %239 = sbr.rel (%p237) target = $region20
        $region19: #{upsampling_resnet_forward.1} parent=11 // pred_region
          _
        $region20: #{upsampling_resnet_forward.1} parent=11 // pred_fallthru
          _
        // Predicated region
        $region21: #{upsampling_resnet_forward.1} parent=11 // pred_check
          %p240 = pneg %p130
        $region22: #{upsampling_resnet_forward.1} parent=11 // pred_check_branch
          %242 = sbr.rel (%p240) target = $region24
        $region23: #{upsampling_resnet_forward.1} parent=11 // pred_region
          _
        $region24: #{upsampling_resnet_forward.1} parent=11 // pred_fallthru
          _
        // Predicated region
        $region25: #{upsampling_resnet_forward.1} parent=11 // pred_check
          %p243 = pneg %p151
        $region26: #{upsampling_resnet_forward.1} parent=11 // pred_check_branch
          %245 = sbr.rel (%p243) target = $region28
        $region27: #{upsampling_resnet_forward.1} parent=11 // pred_region
          %247 = vsyncadd [#allocation5], 0
          %s248 = sshll.u32 %s5, 4
          %s249 = int_to_ptr.hbm [resolvable:$true] %s248
          %s250 = sshll.u32 [#allocation4], 4
          %s251 = int_to_ptr.vmem [resolvable:$true] %s250
          %256 = dma.hbm_to_vmem [thread:$0]  %s249, 16384, %s251, [#allocation5], 256, 256, 16
        $region28: #{upsampling_resnet_forward.1} parent=11 // pred_fallthru
          _
        // Predicated region
        $region29: #{upsampling_resnet_forward.1} parent=11 // pred_check
          %p257 = pneg %p172
        $region30: #{upsampling_resnet_forward.1} parent=11 // pred_check_branch
          %259 = sbr.rel (%p257) target = $region32
        $region31: #{upsampling_resnet_forward.1} parent=11 // pred_region
          _
        $region32: #{upsampling_resnet_forward.1} parent=11 // pred_fallthru
          _
        // Predicated region
        $region33: #{upsampling_resnet_forward.1} parent=11 // pred_check
          %p260 = pneg %p193
        $region34: #{upsampling_resnet_forward.1} parent=11 // pred_check_branch
          %262 = sbr.rel (%p260) target = $region36
        $region35: #{upsampling_resnet_forward.1} parent=11 // pred_region
          _
        $region36: #{upsampling_resnet_forward.1} parent=11 // pred_fallthru
          _
      $region12: #{upsampling_resnet_forward.1} parent=5 // pred_fallthru
        _
      %p263 = scmp.lt.s32.totalorder %s15, 2
      // Predicated region
      $region37: #{upsampling_resnet_forward.1} parent=5 // pred_check
        %p264 = pneg %p263
      $region38: #{upsampling_resnet_forward.1} parent=5 // pred_check_branch
        %266 = sbr.rel (%p264) target = $region40
      $region39: #{upsampling_resnet_forward.1} parent=5 // pred_region
        // Predicated region
        $region41: #{upsampling_resnet_forward.1} parent=39 // pred_check
          %p267 = pneg %p35
        $region42: #{upsampling_resnet_forward.1} parent=39 // pred_check_branch
          %269 = sbr.rel (%p267) target = $region44
        $region43: #{upsampling_resnet_forward.1} parent=39 // pred_region
          %p270 = scmp.lt.s32.totalorder %s15, 1
          %s271 = scalar_select %p270, %s15, 1
          %s272 = smul.addr %s271, 2
          %s273 = smul.addr %s272, 8
          %s274 = scalar_lea.vmem %s0, %s273
        $region44: #{upsampling_resnet_forward.1} parent=39 // pred_fallthru
          _
        // Predicated region
        $region45: #{upsampling_resnet_forward.1} parent=39 // pred_check
          %p275 = pneg %p61
        $region46: #{upsampling_resnet_forward.1} parent=39 // pred_check_branch
          %277 = sbr.rel (%p275) target = $region48
        $region47: #{upsampling_resnet_forward.1} parent=39 // pred_region
          %p278 = scmp.lt.s32.totalorder %s15, 1
          %s279 = scalar_select %p278, %s15, 1
          %s280 = smul.addr %s279, 4
          %s281 = smul.addr %s280, 8
          %s282 = scalar_lea.vmem %s1, %s281
        $region48: #{upsampling_resnet_forward.1} parent=39 // pred_fallthru
          _
      $region40: #{upsampling_resnet_forward.1} parent=5 // pred_fallthru
        _
      %p283 = scmp.le.s32.totalorder 1, %s15
      %p284 = scmp.lt.s32.totalorder %s15, 3
      %p285 = pnand %p283, %p284
      %p286 = pneg %p285
      // Predicated region
      $region49: #{upsampling_resnet_forward.1} parent=5 // pred_check
        _
      $region50: #{upsampling_resnet_forward.1} parent=5 // pred_check_branch
        %288 = sbr.rel (%p285) target = $region52
      $region51: #{upsampling_resnet_forward.1} parent=5 // pred_region
        %s289 = ssub.s32 %s15, 1
        // Predicated region
        $region53: #{upsampling_resnet_forward.1} parent=51 // pred_check
          %p290 = pneg %p151
        $region54: #{upsampling_resnet_forward.1} parent=51 // pred_check_branch
          %292 = sbr.rel (%p290) target = $region56
        $region55: #{upsampling_resnet_forward.1} parent=51 // pred_region
          %294 = dma.done [#allocation5], 16384
        $region56: #{upsampling_resnet_forward.1} parent=51 // pred_fallthru
          _
        %p295 = scmp.lt.s32.totalorder %s20, 1
        %s296 = scalar_select %p295, %s20, 1
        %s297 = smul.addr %s296, 2
        %s298 = smul.addr %s297, 8
        %s299 = scalar_lea.vmem %s0, %s298
        %p300 = pneg %p41
        %p301 = pneg %p38
        %p302 = scmp.lt.s32.totalorder %s20, 1
        %s303 = scalar_select %p302, %s20, 1
        %s304 = smul.addr %s303, 4
        %s305 = smul.addr %s304, 8
        %s306 = scalar_lea.vmem %s1, %s305
        %p307 = pneg %p67
        %p308 = pneg %p64
        %p309 = pneg %p88
        %p310 = pneg %p85
        %p311 = pneg %p109
        %p312 = pneg %p106
        %p313 = pneg %p130
        %p314 = pneg %p127
        %p315 = pneg %p151
        %p316 = pneg %p148
        %p317 = pneg %p172
        %p318 = pneg %p169
        %p319 = pneg %p193
        %p320 = pneg %p190
        %p321 = pneg %p219
        %p322 = pneg %p216
        %p323 = scmp.lt.s32.totalorder %s20, 1
        %s324 = scalar_select %p323, %s20, 1
        %s325 = smul.addr %s324, 4
        %s326 = smul.addr %s325, 8
        %s327 = scalar_lea.vmem %s8, %s326
        %p328 = scmp.lt.s32.totalorder %s20, 1
        %s329 = scalar_select %p328, %s20, 1
        %s330 = smul.addr %s329, 2
        %s331 = smul.addr %s330, 8
        %s332 = scalar_lea.vmem %s0, %s331
        %p333 = scmp.lt.s32.totalorder %s20, 1
        %s334 = scalar_select %p333, %s20, 1
        %s335 = smul.addr %s334, 4
        %s336 = smul.addr %s335, 8
        %s337 = scalar_lea.vmem %s1, %s336
        %p338 = scmp.lt.s32.totalorder %s20, 1
        %s339 = scalar_select %p338, %s20, 1
        %s340 = smul.addr %s339, 4
        %s341 = smul.addr %s340, 8
        %s342 = scalar_lea.vmem %s8, %s341
        %v343 = vld [vmem:[%s7] sm:$0x1f]
        %v344 = vld [vmem:[%s7 + $0x8] sm:$0x1f]
        %v345 = vlaneseq
        %vm346 = vcmp.ge.s32.totalorder %v345, 0
        %vm347 = vcmp.lt.s32.totalorder %v345, 512
        %vm348 = vmand %vm346, %vm347
        %349 = vst.msk [vmem:[#allocation2] ss:$8 sm:$0xf] %vm348, 0.0
        %350 = vst.msk [vmem:[#allocation2] ss:$8 sm:$0x0] %vm348, 0.0
        %s351 = scalar_lea.vmem [#allocation2], 65
        %352 = vst.msk [vmem:[%s351] ss:$8 sm:$0xf] %vm348, 0.0
        %353 = vst.msk [vmem:[%s351] ss:$8 sm:$0x0] %vm348, 0.0
        %vm354 = vcmp.lt.s32.totalorder %v345, 256
        %vm355 = vmand %vm346, %vm354
        %356 = vst.msk [vmem:[#allocation3] ss:$8 sm:$0x3] %vm355, 0.0
        %357 = vst.msk [vmem:[#allocation3] ss:$8 sm:$0x0] %vm355, 0.0
        %s358 = scalar_lea.vmem [#allocation3], 33
        %359 = vst.msk [vmem:[%s358] ss:$8 sm:$0x3] %vm355, 0.0
        %360 = vst.msk [vmem:[%s358] ss:$8 sm:$0x0] %vm355, 0.0
        %v361 = vld [vmem:[%s332] sm:$0xff]
        %v362 = vld [vmem:[%s332 + $0x8] sm:$0xff]
        %v363 = vld [vmem:[%s2] sm:$0xff]
        %v364 = vld [vmem:[%s2 + $0x8] sm:$0xff]
        %v365 = vld [vmem:[%s2 + $0x10] sm:$0xff]
        %v366 = vld [vmem:[%s2 + $0x18] sm:$0xff]
        %v367 = vld [vmem:[%s2 + $0x20] sm:$0xff]
        %v368 = vld [vmem:[%s2 + $0x28] sm:$0xff]
        %v369 = vld [vmem:[%s2 + $0x30] sm:$0xff]
        %v370 = vld [vmem:[%s2 + $0x38] sm:$0xff]
        %v371 = vld [vmem:[%s2 + $0x40] sm:$0xff]
        %v372 = vld [vmem:[%s2 + $0x48] sm:$0xff]
        %v373 = vld [vmem:[%s2 + $0x50] sm:$0xff]
        %v374 = vld [vmem:[%s2 + $0x58] sm:$0xff]
        %v375 = vld [vmem:[%s2 + $0x60] sm:$0xff]
        %v376 = vld [vmem:[%s2 + $0x68] sm:$0xff]
        %v377 = vld [vmem:[%s2 + $0x70] sm:$0xff]
        %v378 = vld [vmem:[%s2 + $0x78] sm:$0xff]
        %v379 = vld [vmem:[%s2 + $0x80] sm:$0xff]
        %v380 = vld [vmem:[%s2 + $0x88] sm:$0xff]
        %v381 = vld [vmem:[%s2 + $0x90] sm:$0xff]
        %v382 = vld [vmem:[%s2 + $0x98] sm:$0xff]
        %v383 = vld [vmem:[%s2 + $0xa0] sm:$0xff]
        %v384 = vld [vmem:[%s2 + $0xa8] sm:$0xff]
        %v385 = vld [vmem:[%s2 + $0xb0] sm:$0xff]
        %v386 = vld [vmem:[%s2 + $0xb8] sm:$0xff]
        %v387 = vld [vmem:[%s2 + $0xc0] sm:$0xff]
        %v388 = vld [vmem:[%s2 + $0xc8] sm:$0xff]
        %v389 = vld [vmem:[%s2 + $0xd0] sm:$0xff]
        %v390 = vld [vmem:[%s2 + $0xd8] sm:$0xff]
        %v391 = vld [vmem:[%s2 + $0xe0] sm:$0xff]
        %v392 = vld [vmem:[%s2 + $0xe8] sm:$0xff]
        %v393 = vld [vmem:[%s2 + $0xf0] sm:$0xff]
        %v394 = vld [vmem:[%s2 + $0xf8] sm:$0xff]
        %v395 = vld [vmem:[%s6] sm:$0x3]
        %v397 = vperm.slane %v395, 0
        %v398 = vperm.slane %v395, 1
        %401 = vmatpush.msra.mxu0 %v393
        %402 = vmatpush.msra.mxu0 %v391
        %403 = vmatpush.msra.mxu0 %v389
        %404 = vmatpush.msra.mxu0 %v387
        %405 = vmatpush.msra.mxu0 %v385
        %406 = vmatpush.msra.mxu0 %v383
        %407 = vmatpush.msra.mxu0 %v381
        %408 = vmatpush.msra.mxu0 %v379
        %409 = vmatpush.msra.mxu0 %v377
        %410 = vmatpush.msra.mxu0 %v375
        %411 = vmatpush.msra.mxu0 %v373
        %412 = vmatpush.msra.mxu0 %v371
        %413 = vmatpush.msra.mxu0 %v369
        %414 = vmatpush.msra.mxu0 %v367
        %415 = vmatpush.msra.mxu0 %v365
        %416 = vmatpush.msra.mxu0 %v363
        %417 = vmatmul.f32.gmra.mxu0 %v361
        %v418 = vpop.f32.mrf.mxu0
        %v419 = vadd.f32 %v397, %v418
        %420 = vmatmul.f32.gmra.mxu0 %v362
        %v421 = vpop.f32.mrf.mxu0
        %v422 = vadd.f32 %v397, %v421
        %423 = vdwg.mxu0
        %424 = vmatpush.msra.mxu0 %v394
        %425 = vmatpush.msra.mxu0 %v392
        %426 = vmatpush.msra.mxu0 %v390
        %427 = vmatpush.msra.mxu0 %v388
        %428 = vmatpush.msra.mxu0 %v386
        %429 = vmatpush.msra.mxu0 %v384
        %430 = vmatpush.msra.mxu0 %v382
        %431 = vmatpush.msra.mxu0 %v380
        %432 = vmatpush.msra.mxu0 %v378
        %433 = vmatpush.msra.mxu0 %v376
        %434 = vmatpush.msra.mxu0 %v374
        %435 = vmatpush.msra.mxu0 %v372
        %436 = vmatpush.msra.mxu0 %v370
        %437 = vmatpush.msra.mxu0 %v368
        %438 = vmatpush.msra.mxu0 %v366
        %439 = vmatpush.msra.mxu0 %v364
        %440 = vmatmul.f32.gmra.mxu0 %v361
        %v441 = vpop.f32.mrf.mxu0
        %v442 = vadd.f32 %v398, %v441
        %443 = vmatmul.f32.gmra.mxu0 %v362
        %v444 = vpop.f32.mrf.mxu0
        %v445 = vadd.f32 %v398, %v444
        %446 = vdwg.mxu0
        %v447 = vld [vmem:[%s337] sm:$0xff]
        %v448 = vld [vmem:[%s337 + $0x8] sm:$0xff]
        %v449 = vld [vmem:[%s337 + $0x10] sm:$0xff]
        %v450 = vld [vmem:[%s337 + $0x18] sm:$0xff]
        %vm459 = vcmask 1040384
        %v460 = vrot.slane %v419, 7
        %v461 = vrot.slane %v442, 7
        %v462 = vrot.slane %v447, 7
        %v463 = vrot.slane %v448, 7
        %v464 = vrot.slane %v422, 7
        %v465 = vsel %vm459, %v460, %v464
        %v466 = vrot.slane %v445, 7
        %v467 = vsel %vm459, %v461, %v466
        %v468 = vrot.slane %v449, 7
        %v469 = vsel %vm459, %v462, %v468
        %v470 = vrot.slane %v450, 7
        %v471 = vsel %vm459, %v463, %v470
        %484 = vst [vmem:[#allocation2] sm:$0xfe] %v460
        %485 = vst [vmem:[#allocation2 + $0x8] sm:$0xfe] %v461
        %486 = vst [vmem:[#allocation2 + $0x10] sm:$0xfe] %v462
        %487 = vst [vmem:[#allocation2 + $0x18] sm:$0xfe] %v463
        %488 = vst [vmem:[#allocation2 + $0x20] sm:$0xff] %v465
        %489 = vst [vmem:[#allocation2 + $0x28] sm:$0xff] %v467
        %490 = vst [vmem:[#allocation2 + $0x30] sm:$0xff] %v469
        %491 = vst [vmem:[#allocation2 + $0x38] sm:$0xff] %v471
        %492 = vst [vmem:[#allocation2 + $0x40] sm:$0x1] %v464
        %493 = vst [vmem:[#allocation2 + $0x48] sm:$0x1] %v466
        %494 = vst [vmem:[#allocation2 + $0x50] sm:$0x1] %v468
        %495 = vst [vmem:[#allocation2 + $0x58] sm:$0x1] %v470
        %v496 = vld [vmem:[#allocation4] sm:$0xff]
        %v497 = vld [vmem:[#allocation4 + $0x8] sm:$0xff]
        %v498 = vld [vmem:[#allocation4 + $0x10] sm:$0xff]
        %v499 = vld [vmem:[#allocation4 + $0x18] sm:$0xff]
        %v500 = vld [vmem:[#allocation4 + $0x20] sm:$0xff]
        %v501 = vld [vmem:[#allocation4 + $0x28] sm:$0xff]
        %v502 = vld [vmem:[#allocation4 + $0x30] sm:$0xff]
        %v503 = vld [vmem:[#allocation4 + $0x38] sm:$0xff]
        %v504 = vld [vmem:[#allocation4 + $0x40] sm:$0xff]
        %v505 = vld [vmem:[#allocation4 + $0x48] sm:$0xff]
        %v506 = vld [vmem:[#allocation4 + $0x50] sm:$0xff]
        %v507 = vld [vmem:[#allocation4 + $0x58] sm:$0xff]
        %v508 = vld [vmem:[#allocation4 + $0x60] sm:$0xff]
        %v509 = vld [vmem:[#allocation4 + $0x68] sm:$0xff]
        %v510 = vld [vmem:[#allocation4 + $0x70] sm:$0xff]
        %v511 = vld [vmem:[#allocation4 + $0x78] sm:$0xff]
        %v512 = vld [vmem:[#allocation4 + $0x80] sm:$0xff]
        %v513 = vld [vmem:[#allocation4 + $0x88] sm:$0xff]
        %v514 = vld [vmem:[#allocation4 + $0x90] sm:$0xff]
        %v515 = vld [vmem:[#allocation4 + $0x98] sm:$0xff]
        %v516 = vld [vmem:[#allocation4 + $0xa0] sm:$0xff]
        %v517 = vld [vmem:[#allocation4 + $0xa8] sm:$0xff]
        %v518 = vld [vmem:[#allocation4 + $0xb0] sm:$0xff]
        %v519 = vld [vmem:[#allocation4 + $0xb8] sm:$0xff]
        %v520 = vld [vmem:[#allocation4 + $0xc0] sm:$0xff]
        %v521 = vld [vmem:[#allocation4 + $0xc8] sm:$0xff]
        %v522 = vld [vmem:[#allocation4 + $0xd0] sm:$0xff]
        %v523 = vld [vmem:[#allocation4 + $0xd8] sm:$0xff]
        %v524 = vld [vmem:[#allocation4 + $0xe0] sm:$0xff]
        %v525 = vld [vmem:[#allocation4 + $0xe8] sm:$0xff]
        %v526 = vld [vmem:[#allocation4 + $0xf0] sm:$0xff]
        %v527 = vld [vmem:[#allocation4 + $0xf8] sm:$0xff]
        %v528 = vld [vmem:[#allocation4 + $0x100] sm:$0xff]
        %v529 = vld [vmem:[#allocation4 + $0x108] sm:$0xff]
        %v530 = vld [vmem:[#allocation4 + $0x110] sm:$0xff]
        %v531 = vld [vmem:[#allocation4 + $0x118] sm:$0xff]
        %v532 = vld [vmem:[#allocation4 + $0x120] sm:$0xff]
        %v533 = vld [vmem:[#allocation4 + $0x128] sm:$0xff]
        %v534 = vld [vmem:[#allocation4 + $0x130] sm:$0xff]
        %v535 = vld [vmem:[#allocation4 + $0x138] sm:$0xff]
        %v536 = vld [vmem:[#allocation4 + $0x140] sm:$0xff]
        %v537 = vld [vmem:[#allocation4 + $0x148] sm:$0xff]
        %v538 = vld [vmem:[#allocation4 + $0x150] sm:$0xff]
        %v539 = vld [vmem:[#allocation4 + $0x158] sm:$0xff]
        %v540 = vld [vmem:[#allocation4 + $0x160] sm:$0xff]
        %v541 = vld [vmem:[#allocation4 + $0x168] sm:$0xff]
        %v542 = vld [vmem:[#allocation4 + $0x170] sm:$0xff]
        %v543 = vld [vmem:[#allocation4 + $0x178] sm:$0xff]
        %v544 = vld [vmem:[#allocation4 + $0x180] sm:$0xff]
        %v545 = vld [vmem:[#allocation4 + $0x188] sm:$0xff]
        %v546 = vld [vmem:[#allocation4 + $0x190] sm:$0xff]
        %v547 = vld [vmem:[#allocation4 + $0x198] sm:$0xff]
        %v548 = vld [vmem:[#allocation4 + $0x1a0] sm:$0xff]
        %v549 = vld [vmem:[#allocation4 + $0x1a8] sm:$0xff]
        %v550 = vld [vmem:[#allocation4 + $0x1b0] sm:$0xff]
        %v551 = vld [vmem:[#allocation4 + $0x1b8] sm:$0xff]
        %v552 = vld [vmem:[#allocation4 + $0x1c0] sm:$0xff]
        %v553 = vld [vmem:[#allocation4 + $0x1c8] sm:$0xff]
        %v554 = vld [vmem:[#allocation4 + $0x1d0] sm:$0xff]
        %v555 = vld [vmem:[#allocation4 + $0x1d8] sm:$0xff]
        %v556 = vld [vmem:[#allocation4 + $0x1e0] sm:$0xff]
        %v557 = vld [vmem:[#allocation4 + $0x1e8] sm:$0xff]
        %v558 = vld [vmem:[#allocation4 + $0x1f0] sm:$0xff]
        %v559 = vld [vmem:[#allocation4 + $0x1f8] sm:$0xff]
        %v560 = vld [vmem:[#allocation4 + $0x200] sm:$0xff]
        %v561 = vld [vmem:[#allocation4 + $0x208] sm:$0xff]
        %v562 = vld [vmem:[#allocation4 + $0x210] sm:$0xff]
        %v563 = vld [vmem:[#allocation4 + $0x218] sm:$0xff]
        %v564 = vld [vmem:[#allocation4 + $0x220] sm:$0xff]
        %v565 = vld [vmem:[#allocation4 + $0x228] sm:$0xff]
        %v566 = vld [vmem:[#allocation4 + $0x230] sm:$0xff]
        %v567 = vld [vmem:[#allocation4 + $0x238] sm:$0xff]
        %v568 = vld [vmem:[#allocation4 + $0x240] sm:$0xff]
        %v569 = vld [vmem:[#allocation4 + $0x248] sm:$0xff]
        %v570 = vld [vmem:[#allocation4 + $0x250] sm:$0xff]
        %v571 = vld [vmem:[#allocation4 + $0x258] sm:$0xff]
        %v572 = vld [vmem:[#allocation4 + $0x260] sm:$0xff]
        %v573 = vld [vmem:[#allocation4 + $0x268] sm:$0xff]
        %v574 = vld [vmem:[#allocation4 + $0x270] sm:$0xff]
        %v575 = vld [vmem:[#allocation4 + $0x278] sm:$0xff]
        %v576 = vld [vmem:[#allocation4 + $0x280] sm:$0xff]
        %v577 = vld [vmem:[#allocation4 + $0x288] sm:$0xff]
        %v578 = vld [vmem:[#allocation4 + $0x290] sm:$0xff]
        %v579 = vld [vmem:[#allocation4 + $0x298] sm:$0xff]
        %v580 = vld [vmem:[#allocation4 + $0x2a0] sm:$0xff]
        %v581 = vld [vmem:[#allocation4 + $0x2a8] sm:$0xff]
        %v582 = vld [vmem:[#allocation4 + $0x2b0] sm:$0xff]
        %v583 = vld [vmem:[#allocation4 + $0x2b8] sm:$0xff]
        %v584 = vld [vmem:[#allocation4 + $0x2c0] sm:$0xff]
        %v585 = vld [vmem:[#allocation4 + $0x2c8] sm:$0xff]
        %v586 = vld [vmem:[#allocation4 + $0x2d0] sm:$0xff]
        %v587 = vld [vmem:[#allocation4 + $0x2d8] sm:$0xff]
        %v588 = vld [vmem:[#allocation4 + $0x2e0] sm:$0xff]
        %v589 = vld [vmem:[#allocation4 + $0x2e8] sm:$0xff]
        %v590 = vld [vmem:[#allocation4 + $0x2f0] sm:$0xff]
        %v591 = vld [vmem:[#allocation4 + $0x2f8] sm:$0xff]
        %v592 = vld [vmem:[#allocation4 + $0x300] sm:$0xff]
        %v593 = vld [vmem:[#allocation4 + $0x308] sm:$0xff]
        %v594 = vld [vmem:[#allocation4 + $0x310] sm:$0xff]
        %v595 = vld [vmem:[#allocation4 + $0x318] sm:$0xff]
        %v596 = vld [vmem:[#allocation4 + $0x320] sm:$0xff]
        %v597 = vld [vmem:[#allocation4 + $0x328] sm:$0xff]
        %v598 = vld [vmem:[#allocation4 + $0x330] sm:$0xff]
        %v599 = vld [vmem:[#allocation4 + $0x338] sm:$0xff]
        %v600 = vld [vmem:[#allocation4 + $0x340] sm:$0xff]
        %v601 = vld [vmem:[#allocation4 + $0x348] sm:$0xff]
        %v602 = vld [vmem:[#allocation4 + $0x350] sm:$0xff]
        %v603 = vld [vmem:[#allocation4 + $0x358] sm:$0xff]
        %v604 = vld [vmem:[#allocation4 + $0x360] sm:$0xff]
        %v605 = vld [vmem:[#allocation4 + $0x368] sm:$0xff]
        %v606 = vld [vmem:[#allocation4 + $0x370] sm:$0xff]
        %v607 = vld [vmem:[#allocation4 + $0x378] sm:$0xff]
        %v608 = vld [vmem:[#allocation4 + $0x380] sm:$0xff]
        %v609 = vld [vmem:[#allocation4 + $0x388] sm:$0xff]
        %v610 = vld [vmem:[#allocation4 + $0x390] sm:$0xff]
        %v611 = vld [vmem:[#allocation4 + $0x398] sm:$0xff]
        %v612 = vld [vmem:[#allocation4 + $0x3a0] sm:$0xff]
        %v613 = vld [vmem:[#allocation4 + $0x3a8] sm:$0xff]
        %v614 = vld [vmem:[#allocation4 + $0x3b0] sm:$0xff]
        %v615 = vld [vmem:[#allocation4 + $0x3b8] sm:$0xff]
        %v616 = vld [vmem:[#allocation4 + $0x3c0] sm:$0xff]
        %v617 = vld [vmem:[#allocation4 + $0x3c8] sm:$0xff]
        %v618 = vld [vmem:[#allocation4 + $0x3d0] sm:$0xff]
        %v619 = vld [vmem:[#allocation4 + $0x3d8] sm:$0xff]
        %v620 = vld [vmem:[#allocation4 + $0x3e0] sm:$0xff]
        %v621 = vld [vmem:[#allocation4 + $0x3e8] sm:$0xff]
        %v622 = vld [vmem:[#allocation4 + $0x3f0] sm:$0xff]
        %v623 = vld [vmem:[#allocation4 + $0x3f8] sm:$0xff]
        %v624 = vperm.slane %v343, 4
        %v625 = vperm.slane %v344, 4
        %626 = vmatpush.msra.mxu0 %v526
        %627 = vmatpush.msra.mxu0 %v524
        %628 = vmatpush.msra.mxu0 %v522
        %629 = vmatpush.msra.mxu0 %v520
        %630 = vmatpush.msra.mxu0 %v518
        %631 = vmatpush.msra.mxu0 %v516
        %632 = vmatpush.msra.mxu0 %v514
        %633 = vmatpush.msra.mxu0 %v512
        %634 = vmatpush.msra.mxu0 %v510
        %635 = vmatpush.msra.mxu0 %v508
        %636 = vmatpush.msra.mxu0 %v506
        %637 = vmatpush.msra.mxu0 %v504
        %638 = vmatpush.msra.mxu0 %v502
        %639 = vmatpush.msra.mxu0 %v500
        %640 = vmatpush.msra.mxu0 %v498
        %641 = vmatpush.msra.mxu0 %v496
        %642 = vmatmul.f32.gmra.mxu0 %v419
        %v643 = vpop.f32.mrf.mxu0
        %v644 = vadd.f32 %v624, %v643
        %645 = vmatmul.f32.gmra.mxu0 %v422
        %v646 = vpop.f32.mrf.mxu0
        %v647 = vadd.f32 %v624, %v646
        %648 = vdwg.mxu0
        %649 = vmatpush.msra.mxu0 %v558
        %650 = vmatpush.msra.mxu0 %v556
        %651 = vmatpush.msra.mxu0 %v554
        %652 = vmatpush.msra.mxu0 %v552
        %653 = vmatpush.msra.mxu0 %v550
        %654 = vmatpush.msra.mxu0 %v548
        %655 = vmatpush.msra.mxu0 %v546
        %656 = vmatpush.msra.mxu0 %v544
        %657 = vmatpush.msra.mxu0 %v542
        %658 = vmatpush.msra.mxu0 %v540
        %659 = vmatpush.msra.mxu0 %v538
        %660 = vmatpush.msra.mxu0 %v536
        %661 = vmatpush.msra.mxu0 %v534
        %662 = vmatpush.msra.mxu0 %v532
        %663 = vmatpush.msra.mxu0 %v530
        %664 = vmatpush.msra.mxu0 %v528
        %665 = vmatmul.f32.gmra.mxu0 %v442
        %v666 = vpop.f32.mrf.mxu0
        %v667 = vadd.f32 %v644, %v666
        %668 = vmatmul.f32.gmra.mxu0 %v445
        %v669 = vpop.f32.mrf.mxu0
        %v670 = vadd.f32 %v647, %v669
        %671 = vdwg.mxu0
        %672 = vmatpush.msra.mxu0 %v590
        %673 = vmatpush.msra.mxu0 %v588
        %674 = vmatpush.msra.mxu0 %v586
        %675 = vmatpush.msra.mxu0 %v584
        %676 = vmatpush.msra.mxu0 %v582
        %677 = vmatpush.msra.mxu0 %v580
        %678 = vmatpush.msra.mxu0 %v578
        %679 = vmatpush.msra.mxu0 %v576
        %680 = vmatpush.msra.mxu0 %v574
        %681 = vmatpush.msra.mxu0 %v572
        %682 = vmatpush.msra.mxu0 %v570
        %683 = vmatpush.msra.mxu0 %v568
        %684 = vmatpush.msra.mxu0 %v566
        %685 = vmatpush.msra.mxu0 %v564
        %686 = vmatpush.msra.mxu0 %v562
        %687 = vmatpush.msra.mxu0 %v560
        %688 = vmatmul.f32.gmra.mxu0 %v447
        %v689 = vpop.f32.mrf.mxu0
        %v690 = vadd.f32 %v667, %v689
        %691 = vmatmul.f32.gmra.mxu0 %v449
        %v692 = vpop.f32.mrf.mxu0
        %v693 = vadd.f32 %v670, %v692
        %694 = vdwg.mxu0
        %695 = vmatpush.msra.mxu0 %v622
        %696 = vmatpush.msra.mxu0 %v620
        %697 = vmatpush.msra.mxu0 %v618
        %698 = vmatpush.msra.mxu0 %v616
        %699 = vmatpush.msra.mxu0 %v614
        %700 = vmatpush.msra.mxu0 %v612
        %701 = vmatpush.msra.mxu0 %v610
        %702 = vmatpush.msra.mxu0 %v608
        %703 = vmatpush.msra.mxu0 %v606
        %704 = vmatpush.msra.mxu0 %v604
        %705 = vmatpush.msra.mxu0 %v602
        %706 = vmatpush.msra.mxu0 %v600
        %707 = vmatpush.msra.mxu0 %v598
        %708 = vmatpush.msra.mxu0 %v596
        %709 = vmatpush.msra.mxu0 %v594
        %710 = vmatpush.msra.mxu0 %v592
        %711 = vmatmul.f32.gmra.mxu0 %v448
        %v712 = vpop.f32.mrf.mxu0
        %v713 = vadd.f32 %v690, %v712
        %714 = vmatmul.f32.gmra.mxu0 %v450
        %v715 = vpop.f32.mrf.mxu0
        %v716 = vadd.f32 %v693, %v715
        %717 = vdwg.mxu0
        %718 = vmatpush.msra.mxu0 %v527
        %719 = vmatpush.msra.mxu0 %v525
        %720 = vmatpush.msra.mxu0 %v523
        %721 = vmatpush.msra.mxu0 %v521
        %722 = vmatpush.msra.mxu0 %v519
        %723 = vmatpush.msra.mxu0 %v517
        %724 = vmatpush.msra.mxu0 %v515
        %725 = vmatpush.msra.mxu0 %v513
        %726 = vmatpush.msra.mxu0 %v511
        %727 = vmatpush.msra.mxu0 %v509
        %728 = vmatpush.msra.mxu0 %v507
        %729 = vmatpush.msra.mxu0 %v505
        %730 = vmatpush.msra.mxu0 %v503
        %731 = vmatpush.msra.mxu0 %v501
        %732 = vmatpush.msra.mxu0 %v499
        %733 = vmatpush.msra.mxu0 %v497
        %734 = vmatmul.f32.gmra.mxu0 %v419
        %v735 = vpop.f32.mrf.mxu0
        %v736 = vadd.f32 %v625, %v735
        %737 = vmatmul.f32.gmra.mxu0 %v422
        %v738 = vpop.f32.mrf.mxu0
        %v739 = vadd.f32 %v625, %v738
        %740 = vdwg.mxu0
        %741 = vmatpush.msra.mxu0 %v559
        %742 = vmatpush.msra.mxu0 %v557
        %743 = vmatpush.msra.mxu0 %v555
        %744 = vmatpush.msra.mxu0 %v553
        %745 = vmatpush.msra.mxu0 %v551
        %746 = vmatpush.msra.mxu0 %v549
        %747 = vmatpush.msra.mxu0 %v547
        %748 = vmatpush.msra.mxu0 %v545
        %749 = vmatpush.msra.mxu0 %v543
        %750 = vmatpush.msra.mxu0 %v541
        %751 = vmatpush.msra.mxu0 %v539
        %752 = vmatpush.msra.mxu0 %v537
        %753 = vmatpush.msra.mxu0 %v535
        %754 = vmatpush.msra.mxu0 %v533
        %755 = vmatpush.msra.mxu0 %v531
        %756 = vmatpush.msra.mxu0 %v529
        %757 = vmatmul.f32.gmra.mxu0 %v442
        %v758 = vpop.f32.mrf.mxu0
        %v759 = vadd.f32 %v736, %v758
        %760 = vmatmul.f32.gmra.mxu0 %v445
        %v761 = vpop.f32.mrf.mxu0
        %v762 = vadd.f32 %v739, %v761
        %763 = vdwg.mxu0
        %764 = vmatpush.msra.mxu0 %v591
        %765 = vmatpush.msra.mxu0 %v589
        %766 = vmatpush.msra.mxu0 %v587
        %767 = vmatpush.msra.mxu0 %v585
        %768 = vmatpush.msra.mxu0 %v583
        %769 = vmatpush.msra.mxu0 %v581
        %770 = vmatpush.msra.mxu0 %v579
        %771 = vmatpush.msra.mxu0 %v577
        %772 = vmatpush.msra.mxu0 %v575
        %773 = vmatpush.msra.mxu0 %v573
        %774 = vmatpush.msra.mxu0 %v571
        %775 = vmatpush.msra.mxu0 %v569
        %776 = vmatpush.msra.mxu0 %v567
        %777 = vmatpush.msra.mxu0 %v565
        %778 = vmatpush.msra.mxu0 %v563
        %779 = vmatpush.msra.mxu0 %v561
        %780 = vmatmul.f32.gmra.mxu0 %v447
        %v781 = vpop.f32.mrf.mxu0
        %v782 = vadd.f32 %v759, %v781
        %783 = vmatmul.f32.gmra.mxu0 %v449
        %v784 = vpop.f32.mrf.mxu0
        %v785 = vadd.f32 %v762, %v784
        %786 = vdwg.mxu0
        %787 = vmatpush.msra.mxu0 %v623
        %788 = vmatpush.msra.mxu0 %v621
        %789 = vmatpush.msra.mxu0 %v619
        %790 = vmatpush.msra.mxu0 %v617
        %791 = vmatpush.msra.mxu0 %v615
        %792 = vmatpush.msra.mxu0 %v613
        %793 = vmatpush.msra.mxu0 %v611
        %794 = vmatpush.msra.mxu0 %v609
        %795 = vmatpush.msra.mxu0 %v607
        %796 = vmatpush.msra.mxu0 %v605
        %797 = vmatpush.msra.mxu0 %v603
        %798 = vmatpush.msra.mxu0 %v601
        %799 = vmatpush.msra.mxu0 %v599
        %800 = vmatpush.msra.mxu0 %v597
        %801 = vmatpush.msra.mxu0 %v595
        %802 = vmatpush.msra.mxu0 %v593
        %803 = vmatmul.f32.gmra.mxu0 %v448
        %v804 = vpop.f32.mrf.mxu0
        %v805 = vadd.f32 %v782, %v804
        %806 = vmatmul.f32.gmra.mxu0 %v450
        %v807 = vpop.f32.mrf.mxu0
        %v808 = vadd.f32 %v785, %v807
        %809 = vdwg.mxu0
        %s810 = scalar_lea.vmem %s3, 1024
        %v811 = vld [vmem:[%s810] sm:$0xff]
        %v812 = vld [vmem:[%s810 + $0x8] sm:$0xff]
        %v813 = vld [vmem:[%s810 + $0x10] sm:$0xff]
        %v814 = vld [vmem:[%s810 + $0x18] sm:$0xff]
        %v815 = vld [vmem:[%s810 + $0x20] sm:$0xff]
        %v816 = vld [vmem:[%s810 + $0x28] sm:$0xff]
        %v817 = vld [vmem:[%s810 + $0x30] sm:$0xff]
        %v818 = vld [vmem:[%s810 + $0x38] sm:$0xff]
        %v819 = vld [vmem:[%s810 + $0x40] sm:$0xff]
        %v820 = vld [vmem:[%s810 + $0x48] sm:$0xff]
        %v821 = vld [vmem:[%s810 + $0x50] sm:$0xff]
        %v822 = vld [vmem:[%s810 + $0x58] sm:$0xff]
        %v823 = vld [vmem:[%s810 + $0x60] sm:$0xff]
        %v824 = vld [vmem:[%s810 + $0x68] sm:$0xff]
        %v825 = vld [vmem:[%s810 + $0x70] sm:$0xff]
        %v826 = vld [vmem:[%s810 + $0x78] sm:$0xff]
        %v827 = vld [vmem:[%s810 + $0x80] sm:$0xff]
        %v828 = vld [vmem:[%s810 + $0x88] sm:$0xff]
        %v829 = vld [vmem:[%s810 + $0x90] sm:$0xff]
        %v830 = vld [vmem:[%s810 + $0x98] sm:$0xff]
        %v831 = vld [vmem:[%s810 + $0xa0] sm:$0xff]
        %v832 = vld [vmem:[%s810 + $0xa8] sm:$0xff]
        %v833 = vld [vmem:[%s810 + $0xb0] sm:$0xff]
        %v834 = vld [vmem:[%s810 + $0xb8] sm:$0xff]
        %v835 = vld [vmem:[%s810 + $0xc0] sm:$0xff]
        %v836 = vld [vmem:[%s810 + $0xc8] sm:$0xff]
        %v837 = vld [vmem:[%s810 + $0xd0] sm:$0xff]
        %v838 = vld [vmem:[%s810 + $0xd8] sm:$0xff]
        %v839 = vld [vmem:[%s810 + $0xe0] sm:$0xff]
        %v840 = vld [vmem:[%s810 + $0xe8] sm:$0xff]
        %v841 = vld [vmem:[%s810 + $0xf0] sm:$0xff]
        %v842 = vld [vmem:[%s810 + $0xf8] sm:$0xff]
        %v843 = vld [vmem:[%s810 + $0x100] sm:$0xff]
        %v844 = vld [vmem:[%s810 + $0x108] sm:$0xff]
        %v845 = vld [vmem:[%s810 + $0x110] sm:$0xff]
        %v846 = vld [vmem:[%s810 + $0x118] sm:$0xff]
        %v847 = vld [vmem:[%s810 + $0x120] sm:$0xff]
        %v848 = vld [vmem:[%s810 + $0x128] sm:$0xff]
        %v849 = vld [vmem:[%s810 + $0x130] sm:$0xff]
        %v850 = vld [vmem:[%s810 + $0x138] sm:$0xff]
        %v851 = vld [vmem:[%s810 + $0x140] sm:$0xff]
        %v852 = vld [vmem:[%s810 + $0x148] sm:$0xff]
        %v853 = vld [vmem:[%s810 + $0x150] sm:$0xff]
        %v854 = vld [vmem:[%s810 + $0x158] sm:$0xff]
        %v855 = vld [vmem:[%s810 + $0x160] sm:$0xff]
        %v856 = vld [vmem:[%s810 + $0x168] sm:$0xff]
        %v857 = vld [vmem:[%s810 + $0x170] sm:$0xff]
        %v858 = vld [vmem:[%s810 + $0x178] sm:$0xff]
        %v859 = vld [vmem:[%s810 + $0x180] sm:$0xff]
        %v860 = vld [vmem:[%s810 + $0x188] sm:$0xff]
        %v861 = vld [vmem:[%s810 + $0x190] sm:$0xff]
        %v862 = vld [vmem:[%s810 + $0x198] sm:$0xff]
        %v863 = vld [vmem:[%s810 + $0x1a0] sm:$0xff]
        %v864 = vld [vmem:[%s810 + $0x1a8] sm:$0xff]
        %v865 = vld [vmem:[%s810 + $0x1b0] sm:$0xff]
        %v866 = vld [vmem:[%s810 + $0x1b8] sm:$0xff]
        %v867 = vld [vmem:[%s810 + $0x1c0] sm:$0xff]
        %v868 = vld [vmem:[%s810 + $0x1c8] sm:$0xff]
        %v869 = vld [vmem:[%s810 + $0x1d0] sm:$0xff]
        %v870 = vld [vmem:[%s810 + $0x1d8] sm:$0xff]
        %v871 = vld [vmem:[%s810 + $0x1e0] sm:$0xff]
        %v872 = vld [vmem:[%s810 + $0x1e8] sm:$0xff]
        %v873 = vld [vmem:[%s810 + $0x1f0] sm:$0xff]
        %v874 = vld [vmem:[%s810 + $0x1f8] sm:$0xff]
        %v875 = vld [vmem:[%s810 + $0x200] sm:$0xff]
        %v876 = vld [vmem:[%s810 + $0x208] sm:$0xff]
        %v877 = vld [vmem:[%s810 + $0x210] sm:$0xff]
        %v878 = vld [vmem:[%s810 + $0x218] sm:$0xff]
        %v879 = vld [vmem:[%s810 + $0x220] sm:$0xff]
        %v880 = vld [vmem:[%s810 + $0x228] sm:$0xff]
        %v881 = vld [vmem:[%s810 + $0x230] sm:$0xff]
        %v882 = vld [vmem:[%s810 + $0x238] sm:$0xff]
        %v883 = vld [vmem:[%s810 + $0x240] sm:$0xff]
        %v884 = vld [vmem:[%s810 + $0x248] sm:$0xff]
        %v885 = vld [vmem:[%s810 + $0x250] sm:$0xff]
        %v886 = vld [vmem:[%s810 + $0x258] sm:$0xff]
        %v887 = vld [vmem:[%s810 + $0x260] sm:$0xff]
        %v888 = vld [vmem:[%s810 + $0x268] sm:$0xff]
        %v889 = vld [vmem:[%s810 + $0x270] sm:$0xff]
        %v890 = vld [vmem:[%s810 + $0x278] sm:$0xff]
        %v891 = vld [vmem:[%s810 + $0x280] sm:$0xff]
        %v892 = vld [vmem:[%s810 + $0x288] sm:$0xff]
        %v893 = vld [vmem:[%s810 + $0x290] sm:$0xff]
        %v894 = vld [vmem:[%s810 + $0x298] sm:$0xff]
        %v895 = vld [vmem:[%s810 + $0x2a0] sm:$0xff]
        %v896 = vld [vmem:[%s810 + $0x2a8] sm:$0xff]
        %v897 = vld [vmem:[%s810 + $0x2b0] sm:$0xff]
        %v898 = vld [vmem:[%s810 + $0x2b8] sm:$0xff]
        %v899 = vld [vmem:[%s810 + $0x2c0] sm:$0xff]
        %v900 = vld [vmem:[%s810 + $0x2c8] sm:$0xff]
        %v901 = vld [vmem:[%s810 + $0x2d0] sm:$0xff]
        %v902 = vld [vmem:[%s810 + $0x2d8] sm:$0xff]
        %v903 = vld [vmem:[%s810 + $0x2e0] sm:$0xff]
        %v904 = vld [vmem:[%s810 + $0x2e8] sm:$0xff]
        %v905 = vld [vmem:[%s810 + $0x2f0] sm:$0xff]
        %v906 = vld [vmem:[%s810 + $0x2f8] sm:$0xff]
        %v907 = vld [vmem:[%s810 + $0x300] sm:$0xff]
        %v908 = vld [vmem:[%s810 + $0x308] sm:$0xff]
        %v909 = vld [vmem:[%s810 + $0x310] sm:$0xff]
        %v910 = vld [vmem:[%s810 + $0x318] sm:$0xff]
        %v911 = vld [vmem:[%s810 + $0x320] sm:$0xff]
        %v912 = vld [vmem:[%s810 + $0x328] sm:$0xff]
        %v913 = vld [vmem:[%s810 + $0x330] sm:$0xff]
        %v914 = vld [vmem:[%s810 + $0x338] sm:$0xff]
        %v915 = vld [vmem:[%s810 + $0x340] sm:$0xff]
        %v916 = vld [vmem:[%s810 + $0x348] sm:$0xff]
        %v917 = vld [vmem:[%s810 + $0x350] sm:$0xff]
        %v918 = vld [vmem:[%s810 + $0x358] sm:$0xff]
        %v919 = vld [vmem:[%s810 + $0x360] sm:$0xff]
        %v920 = vld [vmem:[%s810 + $0x368] sm:$0xff]
        %v921 = vld [vmem:[%s810 + $0x370] sm:$0xff]
        %v922 = vld [vmem:[%s810 + $0x378] sm:$0xff]
        %v923 = vld [vmem:[%s810 + $0x380] sm:$0xff]
        %v924 = vld [vmem:[%s810 + $0x388] sm:$0xff]
        %v925 = vld [vmem:[%s810 + $0x390] sm:$0xff]
        %v926 = vld [vmem:[%s810 + $0x398] sm:$0xff]
        %v927 = vld [vmem:[%s810 + $0x3a0] sm:$0xff]
        %v928 = vld [vmem:[%s810 + $0x3a8] sm:$0xff]
        %v929 = vld [vmem:[%s810 + $0x3b0] sm:$0xff]
        %v930 = vld [vmem:[%s810 + $0x3b8] sm:$0xff]
        %v931 = vld [vmem:[%s810 + $0x3c0] sm:$0xff]
        %v932 = vld [vmem:[%s810 + $0x3c8] sm:$0xff]
        %v933 = vld [vmem:[%s810 + $0x3d0] sm:$0xff]
        %v934 = vld [vmem:[%s810 + $0x3d8] sm:$0xff]
        %v935 = vld [vmem:[%s810 + $0x3e0] sm:$0xff]
        %v936 = vld [vmem:[%s810 + $0x3e8] sm:$0xff]
        %v937 = vld [vmem:[%s810 + $0x3f0] sm:$0xff]
        %v938 = vld [vmem:[%s810 + $0x3f8] sm:$0xff]
        %v939 = vld [vmem:[#allocation2] sm:$0xff]
        %v940 = vld [vmem:[#allocation2 + $0x8] sm:$0xff]
        %v941 = vld [vmem:[#allocation2 + $0x10] sm:$0xff]
        %v942 = vld [vmem:[#allocation2 + $0x18] sm:$0xff]
        %v943 = vld [vmem:[#allocation2 + $0x20] sm:$0xff]
        %v944 = vld [vmem:[#allocation2 + $0x28] sm:$0xff]
        %v945 = vld [vmem:[#allocation2 + $0x30] sm:$0xff]
        %v946 = vld [vmem:[#allocation2 + $0x38] sm:$0xff]
        %v947 = vld [vmem:[%s3] sm:$0xff]
        %v948 = vld [vmem:[%s3 + $0x8] sm:$0xff]
        %v949 = vld [vmem:[%s3 + $0x10] sm:$0xff]
        %v950 = vld [vmem:[%s3 + $0x18] sm:$0xff]
        %v951 = vld [vmem:[%s3 + $0x20] sm:$0xff]
        %v952 = vld [vmem:[%s3 + $0x28] sm:$0xff]
        %v953 = vld [vmem:[%s3 + $0x30] sm:$0xff]
        %v954 = vld [vmem:[%s3 + $0x38] sm:$0xff]
        %v955 = vld [vmem:[%s3 + $0x40] sm:$0xff]
        %v956 = vld [vmem:[%s3 + $0x48] sm:$0xff]
        %v957 = vld [vmem:[%s3 + $0x50] sm:$0xff]
        %v958 = vld [vmem:[%s3 + $0x58] sm:$0xff]
        %v959 = vld [vmem:[%s3 + $0x60] sm:$0xff]
        %v960 = vld [vmem:[%s3 + $0x68] sm:$0xff]
        %v961 = vld [vmem:[%s3 + $0x70] sm:$0xff]
        %v962 = vld [vmem:[%s3 + $0x78] sm:$0xff]
        %v963 = vld [vmem:[%s3 + $0x80] sm:$0xff]
        %v964 = vld [vmem:[%s3 + $0x88] sm:$0xff]
        %v965 = vld [vmem:[%s3 + $0x90] sm:$0xff]
        %v966 = vld [vmem:[%s3 + $0x98] sm:$0xff]
        %v967 = vld [vmem:[%s3 + $0xa0] sm:$0xff]
        %v968 = vld [vmem:[%s3 + $0xa8] sm:$0xff]
        %v969 = vld [vmem:[%s3 + $0xb0] sm:$0xff]
        %v970 = vld [vmem:[%s3 + $0xb8] sm:$0xff]
        %v971 = vld [vmem:[%s3 + $0xc0] sm:$0xff]
        %v972 = vld [vmem:[%s3 + $0xc8] sm:$0xff]
        %v973 = vld [vmem:[%s3 + $0xd0] sm:$0xff]
        %v974 = vld [vmem:[%s3 + $0xd8] sm:$0xff]
        %v975 = vld [vmem:[%s3 + $0xe0] sm:$0xff]
        %v976 = vld [vmem:[%s3 + $0xe8] sm:$0xff]
        %v977 = vld [vmem:[%s3 + $0xf0] sm:$0xff]
        %v978 = vld [vmem:[%s3 + $0xf8] sm:$0xff]
        %v979 = vld [vmem:[%s3 + $0x100] sm:$0xff]
        %v980 = vld [vmem:[%s3 + $0x108] sm:$0xff]
        %v981 = vld [vmem:[%s3 + $0x110] sm:$0xff]
        %v982 = vld [vmem:[%s3 + $0x118] sm:$0xff]
        %v983 = vld [vmem:[%s3 + $0x120] sm:$0xff]
        %v984 = vld [vmem:[%s3 + $0x128] sm:$0xff]
        %v985 = vld [vmem:[%s3 + $0x130] sm:$0xff]
        %v986 = vld [vmem:[%s3 + $0x138] sm:$0xff]
        %v987 = vld [vmem:[%s3 + $0x140] sm:$0xff]
        %v988 = vld [vmem:[%s3 + $0x148] sm:$0xff]
        %v989 = vld [vmem:[%s3 + $0x150] sm:$0xff]
        %v990 = vld [vmem:[%s3 + $0x158] sm:$0xff]
        %v991 = vld [vmem:[%s3 + $0x160] sm:$0xff]
        %v992 = vld [vmem:[%s3 + $0x168] sm:$0xff]
        %v993 = vld [vmem:[%s3 + $0x170] sm:$0xff]
        %v994 = vld [vmem:[%s3 + $0x178] sm:$0xff]
        %v995 = vld [vmem:[%s3 + $0x180] sm:$0xff]
        %v996 = vld [vmem:[%s3 + $0x188] sm:$0xff]
        %v997 = vld [vmem:[%s3 + $0x190] sm:$0xff]
        %v998 = vld [vmem:[%s3 + $0x198] sm:$0xff]
        %v999 = vld [vmem:[%s3 + $0x1a0] sm:$0xff]
        %v1000 = vld [vmem:[%s3 + $0x1a8] sm:$0xff]
        %v1001 = vld [vmem:[%s3 + $0x1b0] sm:$0xff]
        %v1002 = vld [vmem:[%s3 + $0x1b8] sm:$0xff]
        %v1003 = vld [vmem:[%s3 + $0x1c0] sm:$0xff]
        %v1004 = vld [vmem:[%s3 + $0x1c8] sm:$0xff]
        %v1005 = vld [vmem:[%s3 + $0x1d0] sm:$0xff]
        %v1006 = vld [vmem:[%s3 + $0x1d8] sm:$0xff]
        %v1007 = vld [vmem:[%s3 + $0x1e0] sm:$0xff]
        %v1008 = vld [vmem:[%s3 + $0x1e8] sm:$0xff]
        %v1009 = vld [vmem:[%s3 + $0x1f0] sm:$0xff]
        %v1010 = vld [vmem:[%s3 + $0x1f8] sm:$0xff]
        %v1011 = vld [vmem:[%s3 + $0x200] sm:$0xff]
        %v1012 = vld [vmem:[%s3 + $0x208] sm:$0xff]
        %v1013 = vld [vmem:[%s3 + $0x210] sm:$0xff]
        %v1014 = vld [vmem:[%s3 + $0x218] sm:$0xff]
        %v1015 = vld [vmem:[%s3 + $0x220] sm:$0xff]
        %v1016 = vld [vmem:[%s3 + $0x228] sm:$0xff]
        %v1017 = vld [vmem:[%s3 + $0x230] sm:$0xff]
        %v1018 = vld [vmem:[%s3 + $0x238] sm:$0xff]
        %v1019 = vld [vmem:[%s3 + $0x240] sm:$0xff]
        %v1020 = vld [vmem:[%s3 + $0x248] sm:$0xff]
        %v1021 = vld [vmem:[%s3 + $0x250] sm:$0xff]
        %v1022 = vld [vmem:[%s3 + $0x258] sm:$0xff]
        %v1023 = vld [vmem:[%s3 + $0x260] sm:$0xff]
        %v1024 = vld [vmem:[%s3 + $0x268] sm:$0xff]
        %v1025 = vld [vmem:[%s3 + $0x270] sm:$0xff]
        %v1026 = vld [vmem:[%s3 + $0x278] sm:$0xff]
        %v1027 = vld [vmem:[%s3 + $0x280] sm:$0xff]
        %v1028 = vld [vmem:[%s3 + $0x288] sm:$0xff]
        %v1029 = vld [vmem:[%s3 + $0x290] sm:$0xff]
        %v1030 = vld [vmem:[%s3 + $0x298] sm:$0xff]
        %v1031 = vld [vmem:[%s3 + $0x2a0] sm:$0xff]
        %v1032 = vld [vmem:[%s3 + $0x2a8] sm:$0xff]
        %v1033 = vld [vmem:[%s3 + $0x2b0] sm:$0xff]
        %v1034 = vld [vmem:[%s3 + $0x2b8] sm:$0xff]
        %v1035 = vld [vmem:[%s3 + $0x2c0] sm:$0xff]
        %v1036 = vld [vmem:[%s3 + $0x2c8] sm:$0xff]
        %v1037 = vld [vmem:[%s3 + $0x2d0] sm:$0xff]
        %v1038 = vld [vmem:[%s3 + $0x2d8] sm:$0xff]
        %v1039 = vld [vmem:[%s3 + $0x2e0] sm:$0xff]
        %v1040 = vld [vmem:[%s3 + $0x2e8] sm:$0xff]
        %v1041 = vld [vmem:[%s3 + $0x2f0] sm:$0xff]
        %v1042 = vld [vmem:[%s3 + $0x2f8] sm:$0xff]
        %v1043 = vld [vmem:[%s3 + $0x300] sm:$0xff]
        %v1044 = vld [vmem:[%s3 + $0x308] sm:$0xff]
        %v1045 = vld [vmem:[%s3 + $0x310] sm:$0xff]
        %v1046 = vld [vmem:[%s3 + $0x318] sm:$0xff]
        %v1047 = vld [vmem:[%s3 + $0x320] sm:$0xff]
        %v1048 = vld [vmem:[%s3 + $0x328] sm:$0xff]
        %v1049 = vld [vmem:[%s3 + $0x330] sm:$0xff]
        %v1050 = vld [vmem:[%s3 + $0x338] sm:$0xff]
        %v1051 = vld [vmem:[%s3 + $0x340] sm:$0xff]
        %v1052 = vld [vmem:[%s3 + $0x348] sm:$0xff]
        %v1053 = vld [vmem:[%s3 + $0x350] sm:$0xff]
        %v1054 = vld [vmem:[%s3 + $0x358] sm:$0xff]
        %v1055 = vld [vmem:[%s3 + $0x360] sm:$0xff]
        %v1056 = vld [vmem:[%s3 + $0x368] sm:$0xff]
        %v1057 = vld [vmem:[%s3 + $0x370] sm:$0xff]
        %v1058 = vld [vmem:[%s3 + $0x378] sm:$0xff]
        %v1059 = vld [vmem:[%s3 + $0x380] sm:$0xff]
        %v1060 = vld [vmem:[%s3 + $0x388] sm:$0xff]
        %v1061 = vld [vmem:[%s3 + $0x390] sm:$0xff]
        %v1062 = vld [vmem:[%s3 + $0x398] sm:$0xff]
        %v1063 = vld [vmem:[%s3 + $0x3a0] sm:$0xff]
        %v1064 = vld [vmem:[%s3 + $0x3a8] sm:$0xff]
        %v1065 = vld [vmem:[%s3 + $0x3b0] sm:$0xff]
        %v1066 = vld [vmem:[%s3 + $0x3b8] sm:$0xff]
        %v1067 = vld [vmem:[%s3 + $0x3c0] sm:$0xff]
        %v1068 = vld [vmem:[%s3 + $0x3c8] sm:$0xff]
        %v1069 = vld [vmem:[%s3 + $0x3d0] sm:$0xff]
        %v1070 = vld [vmem:[%s3 + $0x3d8] sm:$0xff]
        %v1071 = vld [vmem:[%s3 + $0x3e0] sm:$0xff]
        %v1072 = vld [vmem:[%s3 + $0x3e8] sm:$0xff]
        %v1073 = vld [vmem:[%s3 + $0x3f0] sm:$0xff]
        %v1074 = vld [vmem:[%s3 + $0x3f8] sm:$0xff]
        %1075 = vmatpush.msra.mxu0 %v977
        %1076 = vmatpush.msra.mxu0 %v975
        %1077 = vmatpush.msra.mxu0 %v973
        %1078 = vmatpush.msra.mxu0 %v971
        %1079 = vmatpush.msra.mxu0 %v969
        %1080 = vmatpush.msra.mxu0 %v967
        %1081 = vmatpush.msra.mxu0 %v965
        %1082 = vmatpush.msra.mxu0 %v963
        %1083 = vmatpush.msra.mxu0 %v961
        %1084 = vmatpush.msra.mxu0 %v959
        %1085 = vmatpush.msra.mxu0 %v957
        %1086 = vmatpush.msra.mxu0 %v955
        %1087 = vmatpush.msra.mxu0 %v953
        %1088 = vmatpush.msra.mxu0 %v951
        %1089 = vmatpush.msra.mxu0 %v949
        %1090 = vmatpush.msra.mxu0 %v947
        %1091 = vmatmul.f32.gmra.mxu0 %v939
        %v1092 = vpop.f32.mrf.mxu0
        %v1093 = vadd.f32 0.0, %v1092
        %1094 = vmatmul.f32.gmra.mxu0 %v943
        %v1095 = vpop.f32.mrf.mxu0
        %v1096 = vadd.f32 0.0, %v1095
        %1097 = vdwg.mxu0
        %1098 = vmatpush.msra.mxu0 %v1009
        %1099 = vmatpush.msra.mxu0 %v1007
        %1100 = vmatpush.msra.mxu0 %v1005
        %1101 = vmatpush.msra.mxu0 %v1003
        %1102 = vmatpush.msra.mxu0 %v1001
        %1103 = vmatpush.msra.mxu0 %v999
        %1104 = vmatpush.msra.mxu0 %v997
        %1105 = vmatpush.msra.mxu0 %v995
        %1106 = vmatpush.msra.mxu0 %v993
        %1107 = vmatpush.msra.mxu0 %v991
        %1108 = vmatpush.msra.mxu0 %v989
        %1109 = vmatpush.msra.mxu0 %v987
        %1110 = vmatpush.msra.mxu0 %v985
        %1111 = vmatpush.msra.mxu0 %v983
        %1112 = vmatpush.msra.mxu0 %v981
        %1113 = vmatpush.msra.mxu0 %v979
        %1114 = vmatmul.f32.gmra.mxu0 %v940
        %v1115 = vpop.f32.mrf.mxu0
        %v1116 = vadd.f32 %v1093, %v1115
        %1117 = vmatmul.f32.gmra.mxu0 %v944
        %v1118 = vpop.f32.mrf.mxu0
        %v1119 = vadd.f32 %v1096, %v1118
        %1120 = vdwg.mxu0
        %1121 = vmatpush.msra.mxu0 %v1041
        %1122 = vmatpush.msra.mxu0 %v1039
        %1123 = vmatpush.msra.mxu0 %v1037
        %1124 = vmatpush.msra.mxu0 %v1035
        %1125 = vmatpush.msra.mxu0 %v1033
        %1126 = vmatpush.msra.mxu0 %v1031
        %1127 = vmatpush.msra.mxu0 %v1029
        %1128 = vmatpush.msra.mxu0 %v1027
        %1129 = vmatpush.msra.mxu0 %v1025
        %1130 = vmatpush.msra.mxu0 %v1023
        %1131 = vmatpush.msra.mxu0 %v1021
        %1132 = vmatpush.msra.mxu0 %v1019
        %1133 = vmatpush.msra.mxu0 %v1017
        %1134 = vmatpush.msra.mxu0 %v1015
        %1135 = vmatpush.msra.mxu0 %v1013
        %1136 = vmatpush.msra.mxu0 %v1011
        %1137 = vmatmul.f32.gmra.mxu0 %v941
        %v1138 = vpop.f32.mrf.mxu0
        %v1139 = vadd.f32 %v1116, %v1138
        %1140 = vmatmul.f32.gmra.mxu0 %v945
        %v1141 = vpop.f32.mrf.mxu0
        %v1142 = vadd.f32 %v1119, %v1141
        %1143 = vdwg.mxu0
        %1144 = vmatpush.msra.mxu0 %v1073
        %1145 = vmatpush.msra.mxu0 %v1071
        %1146 = vmatpush.msra.mxu0 %v1069
        %1147 = vmatpush.msra.mxu0 %v1067
        %1148 = vmatpush.msra.mxu0 %v1065
        %1149 = vmatpush.msra.mxu0 %v1063
        %1150 = vmatpush.msra.mxu0 %v1061
        %1151 = vmatpush.msra.mxu0 %v1059
        %1152 = vmatpush.msra.mxu0 %v1057
        %1153 = vmatpush.msra.mxu0 %v1055
        %1154 = vmatpush.msra.mxu0 %v1053
        %1155 = vmatpush.msra.mxu0 %v1051
        %1156 = vmatpush.msra.mxu0 %v1049
        %1157 = vmatpush.msra.mxu0 %v1047
        %1158 = vmatpush.msra.mxu0 %v1045
        %1159 = vmatpush.msra.mxu0 %v1043
        %1160 = vmatmul.f32.gmra.mxu0 %v942
        %v1161 = vpop.f32.mrf.mxu0
        %v1162 = vadd.f32 %v1139, %v1161
        %1163 = vmatmul.f32.gmra.mxu0 %v946
        %v1164 = vpop.f32.mrf.mxu0
        %v1165 = vadd.f32 %v1142, %v1164
        %1166 = vdwg.mxu0
        %1167 = vmatpush.msra.mxu0 %v978
        %1168 = vmatpush.msra.mxu0 %v976
        %1169 = vmatpush.msra.mxu0 %v974
        %1170 = vmatpush.msra.mxu0 %v972
        %1171 = vmatpush.msra.mxu0 %v970
        %1172 = vmatpush.msra.mxu0 %v968
        %1173 = vmatpush.msra.mxu0 %v966
        %1174 = vmatpush.msra.mxu0 %v964
        %1175 = vmatpush.msra.mxu0 %v962
        %1176 = vmatpush.msra.mxu0 %v960
        %1177 = vmatpush.msra.mxu0 %v958
        %1178 = vmatpush.msra.mxu0 %v956
        %1179 = vmatpush.msra.mxu0 %v954
        %1180 = vmatpush.msra.mxu0 %v952
        %1181 = vmatpush.msra.mxu0 %v950
        %1182 = vmatpush.msra.mxu0 %v948
        %1183 = vmatmul.f32.gmra.mxu0 %v939
        %v1184 = vpop.f32.mrf.mxu0
        %v1185 = vadd.f32 0.0, %v1184
        %1186 = vmatmul.f32.gmra.mxu0 %v943
        %v1187 = vpop.f32.mrf.mxu0
        %v1188 = vadd.f32 0.0, %v1187
        %1189 = vdwg.mxu0
        %1190 = vmatpush.msra.mxu0 %v1010
        %1191 = vmatpush.msra.mxu0 %v1008
        %1192 = vmatpush.msra.mxu0 %v1006
        %1193 = vmatpush.msra.mxu0 %v1004
        %1194 = vmatpush.msra.mxu0 %v1002
        %1195 = vmatpush.msra.mxu0 %v1000
        %1196 = vmatpush.msra.mxu0 %v998
        %1197 = vmatpush.msra.mxu0 %v996
        %1198 = vmatpush.msra.mxu0 %v994
        %1199 = vmatpush.msra.mxu0 %v992
        %1200 = vmatpush.msra.mxu0 %v990
        %1201 = vmatpush.msra.mxu0 %v988
        %1202 = vmatpush.msra.mxu0 %v986
        %1203 = vmatpush.msra.mxu0 %v984
        %1204 = vmatpush.msra.mxu0 %v982
        %1205 = vmatpush.msra.mxu0 %v980
        %1206 = vmatmul.f32.gmra.mxu0 %v940
        %v1207 = vpop.f32.mrf.mxu0
        %v1208 = vadd.f32 %v1185, %v1207
        %1209 = vmatmul.f32.gmra.mxu0 %v944
        %v1210 = vpop.f32.mrf.mxu0
        %v1211 = vadd.f32 %v1188, %v1210
        %1212 = vdwg.mxu0
        %1213 = vmatpush.msra.mxu0 %v1042
        %1214 = vmatpush.msra.mxu0 %v1040
        %1215 = vmatpush.msra.mxu0 %v1038
        %1216 = vmatpush.msra.mxu0 %v1036
        %1217 = vmatpush.msra.mxu0 %v1034
        %1218 = vmatpush.msra.mxu0 %v1032
        %1219 = vmatpush.msra.mxu0 %v1030
        %1220 = vmatpush.msra.mxu0 %v1028
        %1221 = vmatpush.msra.mxu0 %v1026
        %1222 = vmatpush.msra.mxu0 %v1024
        %1223 = vmatpush.msra.mxu0 %v1022
        %1224 = vmatpush.msra.mxu0 %v1020
        %1225 = vmatpush.msra.mxu0 %v1018
        %1226 = vmatpush.msra.mxu0 %v1016
        %1227 = vmatpush.msra.mxu0 %v1014
        %1228 = vmatpush.msra.mxu0 %v1012
        %1229 = vmatmul.f32.gmra.mxu0 %v941
        %v1230 = vpop.f32.mrf.mxu0
        %v1231 = vadd.f32 %v1208, %v1230
        %1232 = vmatmul.f32.gmra.mxu0 %v945
        %v1233 = vpop.f32.mrf.mxu0
        %v1234 = vadd.f32 %v1211, %v1233
        %1235 = vdwg.mxu0
        %1236 = vmatpush.msra.mxu0 %v1074
        %1237 = vmatpush.msra.mxu0 %v1072
        %1238 = vmatpush.msra.mxu0 %v1070
        %1239 = vmatpush.msra.mxu0 %v1068
        %1240 = vmatpush.msra.mxu0 %v1066
        %1241 = vmatpush.msra.mxu0 %v1064
        %1242 = vmatpush.msra.mxu0 %v1062
        %1243 = vmatpush.msra.mxu0 %v1060
        %1244 = vmatpush.msra.mxu0 %v1058
        %1245 = vmatpush.msra.mxu0 %v1056
        %1246 = vmatpush.msra.mxu0 %v1054
        %1247 = vmatpush.msra.mxu0 %v1052
        %1248 = vmatpush.msra.mxu0 %v1050
        %1249 = vmatpush.msra.mxu0 %v1048
        %1250 = vmatpush.msra.mxu0 %v1046
        %1251 = vmatpush.msra.mxu0 %v1044
        %1252 = vmatmul.f32.gmra.mxu0 %v942
        %v1253 = vpop.f32.mrf.mxu0
        %v1254 = vadd.f32 %v1231, %v1253
        %1255 = vmatmul.f32.gmra.mxu0 %v946
        %v1256 = vpop.f32.mrf.mxu0
        %v1257 = vadd.f32 %v1234, %v1256
        %1258 = vdwg.mxu0
        %1259 = vmatpush.msra.mxu0 %v841
        %1260 = vmatpush.msra.mxu0 %v839
        %1261 = vmatpush.msra.mxu0 %v837
        %1262 = vmatpush.msra.mxu0 %v835
        %1263 = vmatpush.msra.mxu0 %v833
        %1264 = vmatpush.msra.mxu0 %v831
        %1265 = vmatpush.msra.mxu0 %v829
        %1266 = vmatpush.msra.mxu0 %v827
        %1267 = vmatpush.msra.mxu0 %v825
        %1268 = vmatpush.msra.mxu0 %v823
        %1269 = vmatpush.msra.mxu0 %v821
        %1270 = vmatpush.msra.mxu0 %v819
        %1271 = vmatpush.msra.mxu0 %v817
        %1272 = vmatpush.msra.mxu0 %v815
        %1273 = vmatpush.msra.mxu0 %v813
        %1274 = vmatpush.msra.mxu0 %v811
        %1275 = vmatmul.f32.gmra.mxu0 %v419
        %v1276 = vpop.f32.mrf.mxu0
        %v1277 = vadd.f32 %v1162, %v1276
        %1278 = vmatmul.f32.gmra.mxu0 %v422
        %v1279 = vpop.f32.mrf.mxu0
        %v1280 = vadd.f32 %v1165, %v1279
        %1281 = vdwg.mxu0
        %1282 = vmatpush.msra.mxu0 %v873
        %1283 = vmatpush.msra.mxu0 %v871
        %1284 = vmatpush.msra.mxu0 %v869
        %1285 = vmatpush.msra.mxu0 %v867
        %1286 = vmatpush.msra.mxu0 %v865
        %1287 = vmatpush.msra.mxu0 %v863
        %1288 = vmatpush.msra.mxu0 %v861
        %1289 = vmatpush.msra.mxu0 %v859
        %1290 = vmatpush.msra.mxu0 %v857
        %1291 = vmatpush.msra.mxu0 %v855
        %1292 = vmatpush.msra.mxu0 %v853
        %1293 = vmatpush.msra.mxu0 %v851
        %1294 = vmatpush.msra.mxu0 %v849
        %1295 = vmatpush.msra.mxu0 %v847
        %1296 = vmatpush.msra.mxu0 %v845
        %1297 = vmatpush.msra.mxu0 %v843
        %1298 = vmatmul.f32.gmra.mxu0 %v442
        %v1299 = vpop.f32.mrf.mxu0
        %v1300 = vadd.f32 %v1277, %v1299
        %1301 = vmatmul.f32.gmra.mxu0 %v445
        %v1302 = vpop.f32.mrf.mxu0
        %v1303 = vadd.f32 %v1280, %v1302
        %1304 = vdwg.mxu0
        %1305 = vmatpush.msra.mxu0 %v905
        %1306 = vmatpush.msra.mxu0 %v903
        %1307 = vmatpush.msra.mxu0 %v901
        %1308 = vmatpush.msra.mxu0 %v899
        %1309 = vmatpush.msra.mxu0 %v897
        %1310 = vmatpush.msra.mxu0 %v895
        %1311 = vmatpush.msra.mxu0 %v893
        %1312 = vmatpush.msra.mxu0 %v891
        %1313 = vmatpush.msra.mxu0 %v889
        %1314 = vmatpush.msra.mxu0 %v887
        %1315 = vmatpush.msra.mxu0 %v885
        %1316 = vmatpush.msra.mxu0 %v883
        %1317 = vmatpush.msra.mxu0 %v881
        %1318 = vmatpush.msra.mxu0 %v879
        %1319 = vmatpush.msra.mxu0 %v877
        %1320 = vmatpush.msra.mxu0 %v875
        %1321 = vmatmul.f32.gmra.mxu0 %v447
        %v1322 = vpop.f32.mrf.mxu0
        %v1323 = vadd.f32 %v1300, %v1322
        %1324 = vmatmul.f32.gmra.mxu0 %v449
        %v1325 = vpop.f32.mrf.mxu0
        %v1326 = vadd.f32 %v1303, %v1325
        %1327 = vdwg.mxu0
        %1328 = vmatpush.msra.mxu0 %v937
        %1329 = vmatpush.msra.mxu0 %v935
        %1330 = vmatpush.msra.mxu0 %v933
        %1331 = vmatpush.msra.mxu0 %v931
        %1332 = vmatpush.msra.mxu0 %v929
        %1333 = vmatpush.msra.mxu0 %v927
        %1334 = vmatpush.msra.mxu0 %v925
        %1335 = vmatpush.msra.mxu0 %v923
        %1336 = vmatpush.msra.mxu0 %v921
        %1337 = vmatpush.msra.mxu0 %v919
        %1338 = vmatpush.msra.mxu0 %v917
        %1339 = vmatpush.msra.mxu0 %v915
        %1340 = vmatpush.msra.mxu0 %v913
        %1341 = vmatpush.msra.mxu0 %v911
        %1342 = vmatpush.msra.mxu0 %v909
        %1343 = vmatpush.msra.mxu0 %v907
        %1344 = vmatmul.f32.gmra.mxu0 %v448
        %v1345 = vpop.f32.mrf.mxu0
        %v1346 = vadd.f32 %v1323, %v1345
        %1347 = vmatmul.f32.gmra.mxu0 %v450
        %v1348 = vpop.f32.mrf.mxu0
        %v1349 = vadd.f32 %v1326, %v1348
        %1350 = vdwg.mxu0
        %1351 = vmatpush.msra.mxu0 %v842
        %1352 = vmatpush.msra.mxu0 %v840
        %1353 = vmatpush.msra.mxu0 %v838
        %1354 = vmatpush.msra.mxu0 %v836
        %1355 = vmatpush.msra.mxu0 %v834
        %1356 = vmatpush.msra.mxu0 %v832
        %1357 = vmatpush.msra.mxu0 %v830
        %1358 = vmatpush.msra.mxu0 %v828
        %1359 = vmatpush.msra.mxu0 %v826
        %1360 = vmatpush.msra.mxu0 %v824
        %1361 = vmatpush.msra.mxu0 %v822
        %1362 = vmatpush.msra.mxu0 %v820
        %1363 = vmatpush.msra.mxu0 %v818
        %1364 = vmatpush.msra.mxu0 %v816
        %1365 = vmatpush.msra.mxu0 %v814
        %1366 = vmatpush.msra.mxu0 %v812
        %1367 = vmatmul.f32.gmra.mxu0 %v419
        %v1368 = vpop.f32.mrf.mxu0
        %v1369 = vadd.f32 %v1254, %v1368
        %1370 = vmatmul.f32.gmra.mxu0 %v422
        %v1371 = vpop.f32.mrf.mxu0
        %v1372 = vadd.f32 %v1257, %v1371
        %1373 = vdwg.mxu0
        %1374 = vmatpush.msra.mxu0 %v874
        %1375 = vmatpush.msra.mxu0 %v872
        %1376 = vmatpush.msra.mxu0 %v870
        %1377 = vmatpush.msra.mxu0 %v868
        %1378 = vmatpush.msra.mxu0 %v866
        %1379 = vmatpush.msra.mxu0 %v864
        %1380 = vmatpush.msra.mxu0 %v862
        %1381 = vmatpush.msra.mxu0 %v860
        %1382 = vmatpush.msra.mxu0 %v858
        %1383 = vmatpush.msra.mxu0 %v856
        %1384 = vmatpush.msra.mxu0 %v854
        %1385 = vmatpush.msra.mxu0 %v852
        %1386 = vmatpush.msra.mxu0 %v850
        %1387 = vmatpush.msra.mxu0 %v848
        %1388 = vmatpush.msra.mxu0 %v846
        %1389 = vmatpush.msra.mxu0 %v844
        %1390 = vmatmul.f32.gmra.mxu0 %v442
        %v1391 = vpop.f32.mrf.mxu0
        %v1392 = vadd.f32 %v1369, %v1391
        %1393 = vmatmul.f32.gmra.mxu0 %v445
        %v1394 = vpop.f32.mrf.mxu0
        %v1395 = vadd.f32 %v1372, %v1394
        %1396 = vdwg.mxu0
        %1397 = vmatpush.msra.mxu0 %v906
        %1398 = vmatpush.msra.mxu0 %v904
        %1399 = vmatpush.msra.mxu0 %v902
        %1400 = vmatpush.msra.mxu0 %v900
        %1401 = vmatpush.msra.mxu0 %v898
        %1402 = vmatpush.msra.mxu0 %v896
        %1403 = vmatpush.msra.mxu0 %v894
        %1404 = vmatpush.msra.mxu0 %v892
        %1405 = vmatpush.msra.mxu0 %v890
        %1406 = vmatpush.msra.mxu0 %v888
        %1407 = vmatpush.msra.mxu0 %v886
        %1408 = vmatpush.msra.mxu0 %v884
        %1409 = vmatpush.msra.mxu0 %v882
        %1410 = vmatpush.msra.mxu0 %v880
        %1411 = vmatpush.msra.mxu0 %v878
        %1412 = vmatpush.msra.mxu0 %v876
        %1413 = vmatmul.f32.gmra.mxu0 %v447
        %v1414 = vpop.f32.mrf.mxu0
        %v1415 = vadd.f32 %v1392, %v1414
        %1416 = vmatmul.f32.gmra.mxu0 %v449
        %v1417 = vpop.f32.mrf.mxu0
        %v1418 = vadd.f32 %v1395, %v1417
        %1419 = vdwg.mxu0
        %1420 = vmatpush.msra.mxu0 %v938
        %1421 = vmatpush.msra.mxu0 %v936
        %1422 = vmatpush.msra.mxu0 %v934
        %1423 = vmatpush.msra.mxu0 %v932
        %1424 = vmatpush.msra.mxu0 %v930
        %1425 = vmatpush.msra.mxu0 %v928
        %1426 = vmatpush.msra.mxu0 %v926
        %1427 = vmatpush.msra.mxu0 %v924
        %1428 = vmatpush.msra.mxu0 %v922
        %1429 = vmatpush.msra.mxu0 %v920
        %1430 = vmatpush.msra.mxu0 %v918
        %1431 = vmatpush.msra.mxu0 %v916
        %1432 = vmatpush.msra.mxu0 %v914
        %1433 = vmatpush.msra.mxu0 %v912
        %1434 = vmatpush.msra.mxu0 %v910
        %1435 = vmatpush.msra.mxu0 %v908
        %1436 = vmatmul.f32.gmra.mxu0 %v448
        %v1437 = vpop.f32.mrf.mxu0
        %v1438 = vadd.f32 %v1415, %v1437
        %1439 = vmatmul.f32.gmra.mxu0 %v450
        %v1440 = vpop.f32.mrf.mxu0
        %v1441 = vadd.f32 %v1418, %v1440
        %1442 = vdwg.mxu0
        %v1443 = vld [vmem:[#allocation2] sm:$0xfc]
        %v1444 = vld [vmem:[#allocation2 + $0x8] sm:$0xfc]
        %v1445 = vld [vmem:[#allocation2 + $0x10] sm:$0xfc]
        %v1446 = vld [vmem:[#allocation2 + $0x18] sm:$0xfc]
        %v1447 = vld [vmem:[#allocation2 + $0x20] sm:$0xff]
        %v1448 = vld [vmem:[#allocation2 + $0x28] sm:$0xff]
        %v1449 = vld [vmem:[#allocation2 + $0x30] sm:$0xff]
        %v1450 = vld [vmem:[#allocation2 + $0x38] sm:$0xff]
        %v1451 = vld [vmem:[#allocation2 + $0x40] sm:$0x3]
        %v1452 = vld [vmem:[#allocation2 + $0x48] sm:$0x3]
        %v1453 = vld [vmem:[#allocation2 + $0x50] sm:$0x3]
        %v1454 = vld [vmem:[#allocation2 + $0x58] sm:$0x3]
        %s1455 = scalar_lea.vmem %s3, 2048
        %v1456 = vld [vmem:[%s1455] sm:$0xff]
        %v1457 = vld [vmem:[%s1455 + $0x8] sm:$0xff]
        %v1458 = vld [vmem:[%s1455 + $0x10] sm:$0xff]
        %v1459 = vld [vmem:[%s1455 + $0x18] sm:$0xff]
        %v1460 = vld [vmem:[%s1455 + $0x20] sm:$0xff]
        %v1461 = vld [vmem:[%s1455 + $0x28] sm:$0xff]
        %v1462 = vld [vmem:[%s1455 + $0x30] sm:$0xff]
        %v1463 = vld [vmem:[%s1455 + $0x38] sm:$0xff]
        %v1464 = vld [vmem:[%s1455 + $0x40] sm:$0xff]
        %v1465 = vld [vmem:[%s1455 + $0x48] sm:$0xff]
        %v1466 = vld [vmem:[%s1455 + $0x50] sm:$0xff]
        %v1467 = vld [vmem:[%s1455 + $0x58] sm:$0xff]
        %v1468 = vld [vmem:[%s1455 + $0x60] sm:$0xff]
        %v1469 = vld [vmem:[%s1455 + $0x68] sm:$0xff]
        %v1470 = vld [vmem:[%s1455 + $0x70] sm:$0xff]
        %v1471 = vld [vmem:[%s1455 + $0x78] sm:$0xff]
        %v1472 = vld [vmem:[%s1455 + $0x80] sm:$0xff]
        %v1473 = vld [vmem:[%s1455 + $0x88] sm:$0xff]
        %v1474 = vld [vmem:[%s1455 + $0x90] sm:$0xff]
        %v1475 = vld [vmem:[%s1455 + $0x98] sm:$0xff]
        %v1476 = vld [vmem:[%s1455 + $0xa0] sm:$0xff]
        %v1477 = vld [vmem:[%s1455 + $0xa8] sm:$0xff]
        %v1478 = vld [vmem:[%s1455 + $0xb0] sm:$0xff]
        %v1479 = vld [vmem:[%s1455 + $0xb8] sm:$0xff]
        %v1480 = vld [vmem:[%s1455 + $0xc0] sm:$0xff]
        %v1481 = vld [vmem:[%s1455 + $0xc8] sm:$0xff]
        %v1482 = vld [vmem:[%s1455 + $0xd0] sm:$0xff]
        %v1483 = vld [vmem:[%s1455 + $0xd8] sm:$0xff]
        %v1484 = vld [vmem:[%s1455 + $0xe0] sm:$0xff]
        %v1485 = vld [vmem:[%s1455 + $0xe8] sm:$0xff]
        %v1486 = vld [vmem:[%s1455 + $0xf0] sm:$0xff]
        %v1487 = vld [vmem:[%s1455 + $0xf8] sm:$0xff]
        %v1488 = vld [vmem:[%s1455 + $0x100] sm:$0xff]
        %v1489 = vld [vmem:[%s1455 + $0x108] sm:$0xff]
        %v1490 = vld [vmem:[%s1455 + $0x110] sm:$0xff]
        %v1491 = vld [vmem:[%s1455 + $0x118] sm:$0xff]
        %v1492 = vld [vmem:[%s1455 + $0x120] sm:$0xff]
        %v1493 = vld [vmem:[%s1455 + $0x128] sm:$0xff]
        %v1494 = vld [vmem:[%s1455 + $0x130] sm:$0xff]
        %v1495 = vld [vmem:[%s1455 + $0x138] sm:$0xff]
        %v1496 = vld [vmem:[%s1455 + $0x140] sm:$0xff]
        %v1497 = vld [vmem:[%s1455 + $0x148] sm:$0xff]
        %v1498 = vld [vmem:[%s1455 + $0x150] sm:$0xff]
        %v1499 = vld [vmem:[%s1455 + $0x158] sm:$0xff]
        %v1500 = vld [vmem:[%s1455 + $0x160] sm:$0xff]
        %v1501 = vld [vmem:[%s1455 + $0x168] sm:$0xff]
        %v1502 = vld [vmem:[%s1455 + $0x170] sm:$0xff]
        %v1503 = vld [vmem:[%s1455 + $0x178] sm:$0xff]
        %v1504 = vld [vmem:[%s1455 + $0x180] sm:$0xff]
        %v1505 = vld [vmem:[%s1455 + $0x188] sm:$0xff]
        %v1506 = vld [vmem:[%s1455 + $0x190] sm:$0xff]
        %v1507 = vld [vmem:[%s1455 + $0x198] sm:$0xff]
        %v1508 = vld [vmem:[%s1455 + $0x1a0] sm:$0xff]
        %v1509 = vld [vmem:[%s1455 + $0x1a8] sm:$0xff]
        %v1510 = vld [vmem:[%s1455 + $0x1b0] sm:$0xff]
        %v1511 = vld [vmem:[%s1455 + $0x1b8] sm:$0xff]
        %v1512 = vld [vmem:[%s1455 + $0x1c0] sm:$0xff]
        %v1513 = vld [vmem:[%s1455 + $0x1c8] sm:$0xff]
        %v1514 = vld [vmem:[%s1455 + $0x1d0] sm:$0xff]
        %v1515 = vld [vmem:[%s1455 + $0x1d8] sm:$0xff]
        %v1516 = vld [vmem:[%s1455 + $0x1e0] sm:$0xff]
        %v1517 = vld [vmem:[%s1455 + $0x1e8] sm:$0xff]
        %v1518 = vld [vmem:[%s1455 + $0x1f0] sm:$0xff]
        %v1519 = vld [vmem:[%s1455 + $0x1f8] sm:$0xff]
        %v1520 = vld [vmem:[%s1455 + $0x200] sm:$0xff]
        %v1521 = vld [vmem:[%s1455 + $0x208] sm:$0xff]
        %v1522 = vld [vmem:[%s1455 + $0x210] sm:$0xff]
        %v1523 = vld [vmem:[%s1455 + $0x218] sm:$0xff]
        %v1524 = vld [vmem:[%s1455 + $0x220] sm:$0xff]
        %v1525 = vld [vmem:[%s1455 + $0x228] sm:$0xff]
        %v1526 = vld [vmem:[%s1455 + $0x230] sm:$0xff]
        %v1527 = vld [vmem:[%s1455 + $0x238] sm:$0xff]
        %v1528 = vld [vmem:[%s1455 + $0x240] sm:$0xff]
        %v1529 = vld [vmem:[%s1455 + $0x248] sm:$0xff]
        %v1530 = vld [vmem:[%s1455 + $0x250] sm:$0xff]
        %v1531 = vld [vmem:[%s1455 + $0x258] sm:$0xff]
        %v1532 = vld [vmem:[%s1455 + $0x260] sm:$0xff]
        %v1533 = vld [vmem:[%s1455 + $0x268] sm:$0xff]
        %v1534 = vld [vmem:[%s1455 + $0x270] sm:$0xff]
        %v1535 = vld [vmem:[%s1455 + $0x278] sm:$0xff]
        %v1536 = vld [vmem:[%s1455 + $0x280] sm:$0xff]
        %v1537 = vld [vmem:[%s1455 + $0x288] sm:$0xff]
        %v1538 = vld [vmem:[%s1455 + $0x290] sm:$0xff]
        %v1539 = vld [vmem:[%s1455 + $0x298] sm:$0xff]
        %v1540 = vld [vmem:[%s1455 + $0x2a0] sm:$0xff]
        %v1541 = vld [vmem:[%s1455 + $0x2a8] sm:$0xff]
        %v1542 = vld [vmem:[%s1455 + $0x2b0] sm:$0xff]
        %v1543 = vld [vmem:[%s1455 + $0x2b8] sm:$0xff]
        %v1544 = vld [vmem:[%s1455 + $0x2c0] sm:$0xff]
        %v1545 = vld [vmem:[%s1455 + $0x2c8] sm:$0xff]
        %v1546 = vld [vmem:[%s1455 + $0x2d0] sm:$0xff]
        %v1547 = vld [vmem:[%s1455 + $0x2d8] sm:$0xff]
        %v1548 = vld [vmem:[%s1455 + $0x2e0] sm:$0xff]
        %v1549 = vld [vmem:[%s1455 + $0x2e8] sm:$0xff]
        %v1550 = vld [vmem:[%s1455 + $0x2f0] sm:$0xff]
        %v1551 = vld [vmem:[%s1455 + $0x2f8] sm:$0xff]
        %v1552 = vld [vmem:[%s1455 + $0x300] sm:$0xff]
        %v1553 = vld [vmem:[%s1455 + $0x308] sm:$0xff]
        %v1554 = vld [vmem:[%s1455 + $0x310] sm:$0xff]
        %v1555 = vld [vmem:[%s1455 + $0x318] sm:$0xff]
        %v1556 = vld [vmem:[%s1455 + $0x320] sm:$0xff]
        %v1557 = vld [vmem:[%s1455 + $0x328] sm:$0xff]
        %v1558 = vld [vmem:[%s1455 + $0x330] sm:$0xff]
        %v1559 = vld [vmem:[%s1455 + $0x338] sm:$0xff]
        %v1560 = vld [vmem:[%s1455 + $0x340] sm:$0xff]
        %v1561 = vld [vmem:[%s1455 + $0x348] sm:$0xff]
        %v1562 = vld [vmem:[%s1455 + $0x350] sm:$0xff]
        %v1563 = vld [vmem:[%s1455 + $0x358] sm:$0xff]
        %v1564 = vld [vmem:[%s1455 + $0x360] sm:$0xff]
        %v1565 = vld [vmem:[%s1455 + $0x368] sm:$0xff]
        %v1566 = vld [vmem:[%s1455 + $0x370] sm:$0xff]
        %v1567 = vld [vmem:[%s1455 + $0x378] sm:$0xff]
        %v1568 = vld [vmem:[%s1455 + $0x380] sm:$0xff]
        %v1569 = vld [vmem:[%s1455 + $0x388] sm:$0xff]
        %v1570 = vld [vmem:[%s1455 + $0x390] sm:$0xff]
        %v1571 = vld [vmem:[%s1455 + $0x398] sm:$0xff]
        %v1572 = vld [vmem:[%s1455 + $0x3a0] sm:$0xff]
        %v1573 = vld [vmem:[%s1455 + $0x3a8] sm:$0xff]
        %v1574 = vld [vmem:[%s1455 + $0x3b0] sm:$0xff]
        %v1575 = vld [vmem:[%s1455 + $0x3b8] sm:$0xff]
        %v1576 = vld [vmem:[%s1455 + $0x3c0] sm:$0xff]
        %v1577 = vld [vmem:[%s1455 + $0x3c8] sm:$0xff]
        %v1578 = vld [vmem:[%s1455 + $0x3d0] sm:$0xff]
        %v1579 = vld [vmem:[%s1455 + $0x3d8] sm:$0xff]
        %v1580 = vld [vmem:[%s1455 + $0x3e0] sm:$0xff]
        %v1581 = vld [vmem:[%s1455 + $0x3e8] sm:$0xff]
        %v1582 = vld [vmem:[%s1455 + $0x3f0] sm:$0xff]
        %v1583 = vld [vmem:[%s1455 + $0x3f8] sm:$0xff]
        %vm1596 = vcmask 1045504
        %v1597 = vrot.slane %v1443, 2
        %v1598 = vrot.slane %v1447, 2
        %v1599 = vsel %vm1596, %v1597, %v1598
        %v1600 = vrot.slane %v1444, 2
        %v1601 = vrot.slane %v1448, 2
        %v1602 = vsel %vm1596, %v1600, %v1601
        %v1603 = vrot.slane %v1445, 2
        %v1604 = vrot.slane %v1449, 2
        %v1605 = vsel %vm1596, %v1603, %v1604
        %v1606 = vrot.slane %v1446, 2
        %v1607 = vrot.slane %v1450, 2
        %v1608 = vsel %vm1596, %v1606, %v1607
        %v1609 = vrot.slane %v1451, 2
        %v1610 = vsel %vm1596, %v1598, %v1609
        %v1611 = vrot.slane %v1452, 2
        %v1612 = vsel %vm1596, %v1601, %v1611
        %v1613 = vrot.slane %v1453, 2
        %v1614 = vsel %vm1596, %v1604, %v1613
        %v1615 = vrot.slane %v1454, 2
        %v1616 = vsel %vm1596, %v1607, %v1615
        %1625 = vmatpush.msra.mxu0 %v1486
        %1626 = vmatpush.msra.mxu0 %v1484
        %1627 = vmatpush.msra.mxu0 %v1482
        %1628 = vmatpush.msra.mxu0 %v1480
        %1629 = vmatpush.msra.mxu0 %v1478
        %1630 = vmatpush.msra.mxu0 %v1476
        %1631 = vmatpush.msra.mxu0 %v1474
        %1632 = vmatpush.msra.mxu0 %v1472
        %1633 = vmatpush.msra.mxu0 %v1470
        %1634 = vmatpush.msra.mxu0 %v1468
        %1635 = vmatpush.msra.mxu0 %v1466
        %1636 = vmatpush.msra.mxu0 %v1464
        %1637 = vmatpush.msra.mxu0 %v1462
        %1638 = vmatpush.msra.mxu0 %v1460
        %1639 = vmatpush.msra.mxu0 %v1458
        %1640 = vmatpush.msra.mxu0 %v1456
        %1641 = vmatmul.f32.gmra.mxu0 %v1599
        %v1642 = vpop.f32.mrf.mxu0
        %v1643 = vadd.f32 0.0, %v1642
        %1644 = vmatmul.f32.gmra.mxu0 %v1610
        %v1645 = vpop.f32.mrf.mxu0
        %v1646 = vadd.f32 0.0, %v1645
        %1647 = vdwg.mxu0
        %1648 = vmatpush.msra.mxu0 %v1518
        %1649 = vmatpush.msra.mxu0 %v1516
        %1650 = vmatpush.msra.mxu0 %v1514
        %1651 = vmatpush.msra.mxu0 %v1512
        %1652 = vmatpush.msra.mxu0 %v1510
        %1653 = vmatpush.msra.mxu0 %v1508
        %1654 = vmatpush.msra.mxu0 %v1506
        %1655 = vmatpush.msra.mxu0 %v1504
        %1656 = vmatpush.msra.mxu0 %v1502
        %1657 = vmatpush.msra.mxu0 %v1500
        %1658 = vmatpush.msra.mxu0 %v1498
        %1659 = vmatpush.msra.mxu0 %v1496
        %1660 = vmatpush.msra.mxu0 %v1494
        %1661 = vmatpush.msra.mxu0 %v1492
        %1662 = vmatpush.msra.mxu0 %v1490
        %1663 = vmatpush.msra.mxu0 %v1488
        %1664 = vmatmul.f32.gmra.mxu0 %v1602
        %v1665 = vpop.f32.mrf.mxu0
        %v1666 = vadd.f32 %v1643, %v1665
        %1667 = vmatmul.f32.gmra.mxu0 %v1612
        %v1668 = vpop.f32.mrf.mxu0
        %v1669 = vadd.f32 %v1646, %v1668
        %1670 = vdwg.mxu0
        %1671 = vmatpush.msra.mxu0 %v1550
        %1672 = vmatpush.msra.mxu0 %v1548
        %1673 = vmatpush.msra.mxu0 %v1546
        %1674 = vmatpush.msra.mxu0 %v1544
        %1675 = vmatpush.msra.mxu0 %v1542
        %1676 = vmatpush.msra.mxu0 %v1540
        %1677 = vmatpush.msra.mxu0 %v1538
        %1678 = vmatpush.msra.mxu0 %v1536
        %1679 = vmatpush.msra.mxu0 %v1534
        %1680 = vmatpush.msra.mxu0 %v1532
        %1681 = vmatpush.msra.mxu0 %v1530
        %1682 = vmatpush.msra.mxu0 %v1528
        %1683 = vmatpush.msra.mxu0 %v1526
        %1684 = vmatpush.msra.mxu0 %v1524
        %1685 = vmatpush.msra.mxu0 %v1522
        %1686 = vmatpush.msra.mxu0 %v1520
        %1687 = vmatmul.f32.gmra.mxu0 %v1605
        %v1688 = vpop.f32.mrf.mxu0
        %v1689 = vadd.f32 %v1666, %v1688
        %1690 = vmatmul.f32.gmra.mxu0 %v1614
        %v1691 = vpop.f32.mrf.mxu0
        %v1692 = vadd.f32 %v1669, %v1691
        %1693 = vdwg.mxu0
        %1694 = vmatpush.msra.mxu0 %v1582
        %1695 = vmatpush.msra.mxu0 %v1580
        %1696 = vmatpush.msra.mxu0 %v1578
        %1697 = vmatpush.msra.mxu0 %v1576
        %1698 = vmatpush.msra.mxu0 %v1574
        %1699 = vmatpush.msra.mxu0 %v1572
        %1700 = vmatpush.msra.mxu0 %v1570
        %1701 = vmatpush.msra.mxu0 %v1568
        %1702 = vmatpush.msra.mxu0 %v1566
        %1703 = vmatpush.msra.mxu0 %v1564
        %1704 = vmatpush.msra.mxu0 %v1562
        %1705 = vmatpush.msra.mxu0 %v1560
        %1706 = vmatpush.msra.mxu0 %v1558
        %1707 = vmatpush.msra.mxu0 %v1556
        %1708 = vmatpush.msra.mxu0 %v1554
        %1709 = vmatpush.msra.mxu0 %v1552
        %1710 = vmatmul.f32.gmra.mxu0 %v1608
        %v1711 = vpop.f32.mrf.mxu0
        %v1712 = vadd.f32 %v1689, %v1711
        %1713 = vmatmul.f32.gmra.mxu0 %v1616
        %v1714 = vpop.f32.mrf.mxu0
        %v1715 = vadd.f32 %v1692, %v1714
        %1716 = vdwg.mxu0
        %1717 = vmatpush.msra.mxu0 %v1487
        %1718 = vmatpush.msra.mxu0 %v1485
        %1719 = vmatpush.msra.mxu0 %v1483
        %1720 = vmatpush.msra.mxu0 %v1481
        %1721 = vmatpush.msra.mxu0 %v1479
        %1722 = vmatpush.msra.mxu0 %v1477
        %1723 = vmatpush.msra.mxu0 %v1475
        %1724 = vmatpush.msra.mxu0 %v1473
        %1725 = vmatpush.msra.mxu0 %v1471
        %1726 = vmatpush.msra.mxu0 %v1469
        %1727 = vmatpush.msra.mxu0 %v1467
        %1728 = vmatpush.msra.mxu0 %v1465
        %1729 = vmatpush.msra.mxu0 %v1463
        %1730 = vmatpush.msra.mxu0 %v1461
        %1731 = vmatpush.msra.mxu0 %v1459
        %1732 = vmatpush.msra.mxu0 %v1457
        %1733 = vmatmul.f32.gmra.mxu0 %v1599
        %v1734 = vpop.f32.mrf.mxu0
        %v1735 = vadd.f32 0.0, %v1734
        %1736 = vmatmul.f32.gmra.mxu0 %v1610
        %v1737 = vpop.f32.mrf.mxu0
        %v1738 = vadd.f32 0.0, %v1737
        %1739 = vdwg.mxu0
        %1740 = vmatpush.msra.mxu0 %v1519
        %1741 = vmatpush.msra.mxu0 %v1517
        %1742 = vmatpush.msra.mxu0 %v1515
        %1743 = vmatpush.msra.mxu0 %v1513
        %1744 = vmatpush.msra.mxu0 %v1511
        %1745 = vmatpush.msra.mxu0 %v1509
        %1746 = vmatpush.msra.mxu0 %v1507
        %1747 = vmatpush.msra.mxu0 %v1505
        %1748 = vmatpush.msra.mxu0 %v1503
        %1749 = vmatpush.msra.mxu0 %v1501
        %1750 = vmatpush.msra.mxu0 %v1499
        %1751 = vmatpush.msra.mxu0 %v1497
        %1752 = vmatpush.msra.mxu0 %v1495
        %1753 = vmatpush.msra.mxu0 %v1493
        %1754 = vmatpush.msra.mxu0 %v1491
        %1755 = vmatpush.msra.mxu0 %v1489
        %1756 = vmatmul.f32.gmra.mxu0 %v1602
        %v1757 = vpop.f32.mrf.mxu0
        %v1758 = vadd.f32 %v1735, %v1757
        %1759 = vmatmul.f32.gmra.mxu0 %v1612
        %v1760 = vpop.f32.mrf.mxu0
        %v1761 = vadd.f32 %v1738, %v1760
        %1762 = vdwg.mxu0
        %1763 = vmatpush.msra.mxu0 %v1551
        %1764 = vmatpush.msra.mxu0 %v1549
        %1765 = vmatpush.msra.mxu0 %v1547
        %1766 = vmatpush.msra.mxu0 %v1545
        %1767 = vmatpush.msra.mxu0 %v1543
        %1768 = vmatpush.msra.mxu0 %v1541
        %1769 = vmatpush.msra.mxu0 %v1539
        %1770 = vmatpush.msra.mxu0 %v1537
        %1771 = vmatpush.msra.mxu0 %v1535
        %1772 = vmatpush.msra.mxu0 %v1533
        %1773 = vmatpush.msra.mxu0 %v1531
        %1774 = vmatpush.msra.mxu0 %v1529
        %1775 = vmatpush.msra.mxu0 %v1527
        %1776 = vmatpush.msra.mxu0 %v1525
        %1777 = vmatpush.msra.mxu0 %v1523
        %1778 = vmatpush.msra.mxu0 %v1521
        %1779 = vmatmul.f32.gmra.mxu0 %v1605
        %v1780 = vpop.f32.mrf.mxu0
        %v1781 = vadd.f32 %v1758, %v1780
        %1782 = vmatmul.f32.gmra.mxu0 %v1614
        %v1783 = vpop.f32.mrf.mxu0
        %v1784 = vadd.f32 %v1761, %v1783
        %1785 = vdwg.mxu0
        %1786 = vmatpush.msra.mxu0 %v1583
        %1787 = vmatpush.msra.mxu0 %v1581
        %1788 = vmatpush.msra.mxu0 %v1579
        %1789 = vmatpush.msra.mxu0 %v1577
        %1790 = vmatpush.msra.mxu0 %v1575
        %1791 = vmatpush.msra.mxu0 %v1573
        %1792 = vmatpush.msra.mxu0 %v1571
        %1793 = vmatpush.msra.mxu0 %v1569
        %1794 = vmatpush.msra.mxu0 %v1567
        %1795 = vmatpush.msra.mxu0 %v1565
        %1796 = vmatpush.msra.mxu0 %v1563
        %1797 = vmatpush.msra.mxu0 %v1561
        %1798 = vmatpush.msra.mxu0 %v1559
        %1799 = vmatpush.msra.mxu0 %v1557
        %1800 = vmatpush.msra.mxu0 %v1555
        %1801 = vmatpush.msra.mxu0 %v1553
        %1802 = vmatmul.f32.gmra.mxu0 %v1608
        %v1803 = vpop.f32.mrf.mxu0
        %v1804 = vadd.f32 %v1781, %v1803
        %1805 = vmatmul.f32.gmra.mxu0 %v1616
        %v1806 = vpop.f32.mrf.mxu0
        %v1807 = vadd.f32 %v1784, %v1806
        %1808 = vdwg.mxu0
        %v1809 = vadd.f32 %v1346, %v1712
        %v1810 = vadd.f32 %v1438, %v1804
        %v1811 = vadd.f32 %v1349, %v1715
        %v1812 = vadd.f32 %v1441, %v1807
        %v1813 = vperm.slane %v343, 0
        %v1814 = vperm.slane %v344, 0
        %v1815 = vmul.f32 %v1809, %v1813
        %v1816 = vmul.f32 %v1810, %v1814
        %v1817 = vmul.f32 %v1811, %v1813
        %v1818 = vmul.f32 %v1812, %v1814
        %v1819 = vperm.slane %v343, 1
        %v1820 = vperm.slane %v344, 1
        %v1821 = vadd.f32 %v1815, %v1819
        %v1822 = vadd.f32 %v1816, %v1820
        %v1823 = vadd.f32 %v1817, %v1819
        %v1824 = vadd.f32 %v1818, %v1820
        %v1825 = vmax.f32 %v1821, 0.0
        %v1826 = vmax.f32 %v1822, 0.0
        %v1827 = vmax.f32 %v1823, 0.0
        %v1828 = vmax.f32 %v1824, 0.0
        %v1833 = vrot.slane %v1825, 7
        %v1834 = vrot.slane %v1826, 7
        %v1835 = vrot.slane %v1827, 7
        %v1836 = vsel %vm459, %v1833, %v1835
        %v1837 = vrot.slane %v1828, 7
        %v1838 = vsel %vm459, %v1834, %v1837
        %1845 = vst [vmem:[#allocation3] sm:$0xfe] %v1833
        %1846 = vst [vmem:[#allocation3 + $0x8] sm:$0xfe] %v1834
        %1847 = vst [vmem:[#allocation3 + $0x10] sm:$0xff] %v1836
        %1848 = vst [vmem:[#allocation3 + $0x18] sm:$0xff] %v1838
        %1849 = vst [vmem:[#allocation3 + $0x20] sm:$0x1] %v1835
        %1850 = vst [vmem:[#allocation3 + $0x28] sm:$0x1] %v1837
        %s1851 = scalar_lea.vmem %s4, 512
        %v1852 = vld [vmem:[%s1851] sm:$0xff]
        %v1853 = vld [vmem:[%s1851 + $0x8] sm:$0xff]
        %v1854 = vld [vmem:[%s1851 + $0x10] sm:$0xff]
        %v1855 = vld [vmem:[%s1851 + $0x18] sm:$0xff]
        %v1856 = vld [vmem:[%s1851 + $0x20] sm:$0xff]
        %v1857 = vld [vmem:[%s1851 + $0x28] sm:$0xff]
        %v1858 = vld [vmem:[%s1851 + $0x30] sm:$0xff]
        %v1859 = vld [vmem:[%s1851 + $0x38] sm:$0xff]
        %v1860 = vld [vmem:[%s1851 + $0x40] sm:$0xff]
        %v1861 = vld [vmem:[%s1851 + $0x48] sm:$0xff]
        %v1862 = vld [vmem:[%s1851 + $0x50] sm:$0xff]
        %v1863 = vld [vmem:[%s1851 + $0x58] sm:$0xff]
        %v1864 = vld [vmem:[%s1851 + $0x60] sm:$0xff]
        %v1865 = vld [vmem:[%s1851 + $0x68] sm:$0xff]
        %v1866 = vld [vmem:[%s1851 + $0x70] sm:$0xff]
        %v1867 = vld [vmem:[%s1851 + $0x78] sm:$0xff]
        %v1868 = vld [vmem:[%s1851 + $0x80] sm:$0xff]
        %v1869 = vld [vmem:[%s1851 + $0x88] sm:$0xff]
        %v1870 = vld [vmem:[%s1851 + $0x90] sm:$0xff]
        %v1871 = vld [vmem:[%s1851 + $0x98] sm:$0xff]
        %v1872 = vld [vmem:[%s1851 + $0xa0] sm:$0xff]
        %v1873 = vld [vmem:[%s1851 + $0xa8] sm:$0xff]
        %v1874 = vld [vmem:[%s1851 + $0xb0] sm:$0xff]
        %v1875 = vld [vmem:[%s1851 + $0xb8] sm:$0xff]
        %v1876 = vld [vmem:[%s1851 + $0xc0] sm:$0xff]
        %v1877 = vld [vmem:[%s1851 + $0xc8] sm:$0xff]
        %v1878 = vld [vmem:[%s1851 + $0xd0] sm:$0xff]
        %v1879 = vld [vmem:[%s1851 + $0xd8] sm:$0xff]
        %v1880 = vld [vmem:[%s1851 + $0xe0] sm:$0xff]
        %v1881 = vld [vmem:[%s1851 + $0xe8] sm:$0xff]
        %v1882 = vld [vmem:[%s1851 + $0xf0] sm:$0xff]
        %v1883 = vld [vmem:[%s1851 + $0xf8] sm:$0xff]
        %v1884 = vld [vmem:[%s1851 + $0x100] sm:$0xff]
        %v1885 = vld [vmem:[%s1851 + $0x108] sm:$0xff]
        %v1886 = vld [vmem:[%s1851 + $0x110] sm:$0xff]
        %v1887 = vld [vmem:[%s1851 + $0x118] sm:$0xff]
        %v1888 = vld [vmem:[%s1851 + $0x120] sm:$0xff]
        %v1889 = vld [vmem:[%s1851 + $0x128] sm:$0xff]
        %v1890 = vld [vmem:[%s1851 + $0x130] sm:$0xff]
        %v1891 = vld [vmem:[%s1851 + $0x138] sm:$0xff]
        %v1892 = vld [vmem:[%s1851 + $0x140] sm:$0xff]
        %v1893 = vld [vmem:[%s1851 + $0x148] sm:$0xff]
        %v1894 = vld [vmem:[%s1851 + $0x150] sm:$0xff]
        %v1895 = vld [vmem:[%s1851 + $0x158] sm:$0xff]
        %v1896 = vld [vmem:[%s1851 + $0x160] sm:$0xff]
        %v1897 = vld [vmem:[%s1851 + $0x168] sm:$0xff]
        %v1898 = vld [vmem:[%s1851 + $0x170] sm:$0xff]
        %v1899 = vld [vmem:[%s1851 + $0x178] sm:$0xff]
        %v1900 = vld [vmem:[%s1851 + $0x180] sm:$0xff]
        %v1901 = vld [vmem:[%s1851 + $0x188] sm:$0xff]
        %v1902 = vld [vmem:[%s1851 + $0x190] sm:$0xff]
        %v1903 = vld [vmem:[%s1851 + $0x198] sm:$0xff]
        %v1904 = vld [vmem:[%s1851 + $0x1a0] sm:$0xff]
        %v1905 = vld [vmem:[%s1851 + $0x1a8] sm:$0xff]
        %v1906 = vld [vmem:[%s1851 + $0x1b0] sm:$0xff]
        %v1907 = vld [vmem:[%s1851 + $0x1b8] sm:$0xff]
        %v1908 = vld [vmem:[%s1851 + $0x1c0] sm:$0xff]
        %v1909 = vld [vmem:[%s1851 + $0x1c8] sm:$0xff]
        %v1910 = vld [vmem:[%s1851 + $0x1d0] sm:$0xff]
        %v1911 = vld [vmem:[%s1851 + $0x1d8] sm:$0xff]
        %v1912 = vld [vmem:[%s1851 + $0x1e0] sm:$0xff]
        %v1913 = vld [vmem:[%s1851 + $0x1e8] sm:$0xff]
        %v1914 = vld [vmem:[%s1851 + $0x1f0] sm:$0xff]
        %v1915 = vld [vmem:[%s1851 + $0x1f8] sm:$0xff]
        %v1916 = vld [vmem:[#allocation3] sm:$0xff]
        %v1917 = vld [vmem:[#allocation3 + $0x8] sm:$0xff]
        %v1918 = vld [vmem:[#allocation3 + $0x10] sm:$0xff]
        %v1919 = vld [vmem:[#allocation3 + $0x18] sm:$0xff]
        %v1920 = vld [vmem:[%s4] sm:$0xff]
        %v1921 = vld [vmem:[%s4 + $0x8] sm:$0xff]
        %v1922 = vld [vmem:[%s4 + $0x10] sm:$0xff]
        %v1923 = vld [vmem:[%s4 + $0x18] sm:$0xff]
        %v1924 = vld [vmem:[%s4 + $0x20] sm:$0xff]
        %v1925 = vld [vmem:[%s4 + $0x28] sm:$0xff]
        %v1926 = vld [vmem:[%s4 + $0x30] sm:$0xff]
        %v1927 = vld [vmem:[%s4 + $0x38] sm:$0xff]
        %v1928 = vld [vmem:[%s4 + $0x40] sm:$0xff]
        %v1929 = vld [vmem:[%s4 + $0x48] sm:$0xff]
        %v1930 = vld [vmem:[%s4 + $0x50] sm:$0xff]
        %v1931 = vld [vmem:[%s4 + $0x58] sm:$0xff]
        %v1932 = vld [vmem:[%s4 + $0x60] sm:$0xff]
        %v1933 = vld [vmem:[%s4 + $0x68] sm:$0xff]
        %v1934 = vld [vmem:[%s4 + $0x70] sm:$0xff]
        %v1935 = vld [vmem:[%s4 + $0x78] sm:$0xff]
        %v1936 = vld [vmem:[%s4 + $0x80] sm:$0xff]
        %v1937 = vld [vmem:[%s4 + $0x88] sm:$0xff]
        %v1938 = vld [vmem:[%s4 + $0x90] sm:$0xff]
        %v1939 = vld [vmem:[%s4 + $0x98] sm:$0xff]
        %v1940 = vld [vmem:[%s4 + $0xa0] sm:$0xff]
        %v1941 = vld [vmem:[%s4 + $0xa8] sm:$0xff]
        %v1942 = vld [vmem:[%s4 + $0xb0] sm:$0xff]
        %v1943 = vld [vmem:[%s4 + $0xb8] sm:$0xff]
        %v1944 = vld [vmem:[%s4 + $0xc0] sm:$0xff]
        %v1945 = vld [vmem:[%s4 + $0xc8] sm:$0xff]
        %v1946 = vld [vmem:[%s4 + $0xd0] sm:$0xff]
        %v1947 = vld [vmem:[%s4 + $0xd8] sm:$0xff]
        %v1948 = vld [vmem:[%s4 + $0xe0] sm:$0xff]
        %v1949 = vld [vmem:[%s4 + $0xe8] sm:$0xff]
        %v1950 = vld [vmem:[%s4 + $0xf0] sm:$0xff]
        %v1951 = vld [vmem:[%s4 + $0xf8] sm:$0xff]
        %v1952 = vld [vmem:[%s4 + $0x100] sm:$0xff]
        %v1953 = vld [vmem:[%s4 + $0x108] sm:$0xff]
        %v1954 = vld [vmem:[%s4 + $0x110] sm:$0xff]
        %v1955 = vld [vmem:[%s4 + $0x118] sm:$0xff]
        %v1956 = vld [vmem:[%s4 + $0x120] sm:$0xff]
        %v1957 = vld [vmem:[%s4 + $0x128] sm:$0xff]
        %v1958 = vld [vmem:[%s4 + $0x130] sm:$0xff]
        %v1959 = vld [vmem:[%s4 + $0x138] sm:$0xff]
        %v1960 = vld [vmem:[%s4 + $0x140] sm:$0xff]
        %v1961 = vld [vmem:[%s4 + $0x148] sm:$0xff]
        %v1962 = vld [vmem:[%s4 + $0x150] sm:$0xff]
        %v1963 = vld [vmem:[%s4 + $0x158] sm:$0xff]
        %v1964 = vld [vmem:[%s4 + $0x160] sm:$0xff]
        %v1965 = vld [vmem:[%s4 + $0x168] sm:$0xff]
        %v1966 = vld [vmem:[%s4 + $0x170] sm:$0xff]
        %v1967 = vld [vmem:[%s4 + $0x178] sm:$0xff]
        %v1968 = vld [vmem:[%s4 + $0x180] sm:$0xff]
        %v1969 = vld [vmem:[%s4 + $0x188] sm:$0xff]
        %v1970 = vld [vmem:[%s4 + $0x190] sm:$0xff]
        %v1971 = vld [vmem:[%s4 + $0x198] sm:$0xff]
        %v1972 = vld [vmem:[%s4 + $0x1a0] sm:$0xff]
        %v1973 = vld [vmem:[%s4 + $0x1a8] sm:$0xff]
        %v1974 = vld [vmem:[%s4 + $0x1b0] sm:$0xff]
        %v1975 = vld [vmem:[%s4 + $0x1b8] sm:$0xff]
        %v1976 = vld [vmem:[%s4 + $0x1c0] sm:$0xff]
        %v1977 = vld [vmem:[%s4 + $0x1c8] sm:$0xff]
        %v1978 = vld [vmem:[%s4 + $0x1d0] sm:$0xff]
        %v1979 = vld [vmem:[%s4 + $0x1d8] sm:$0xff]
        %v1980 = vld [vmem:[%s4 + $0x1e0] sm:$0xff]
        %v1981 = vld [vmem:[%s4 + $0x1e8] sm:$0xff]
        %v1982 = vld [vmem:[%s4 + $0x1f0] sm:$0xff]
        %v1983 = vld [vmem:[%s4 + $0x1f8] sm:$0xff]
        %1984 = vmatpush.msra.mxu0 %v1950
        %1985 = vmatpush.msra.mxu0 %v1948
        %1986 = vmatpush.msra.mxu0 %v1946
        %1987 = vmatpush.msra.mxu0 %v1944
        %1988 = vmatpush.msra.mxu0 %v1942
        %1989 = vmatpush.msra.mxu0 %v1940
        %1990 = vmatpush.msra.mxu0 %v1938
        %1991 = vmatpush.msra.mxu0 %v1936
        %1992 = vmatpush.msra.mxu0 %v1934
        %1993 = vmatpush.msra.mxu0 %v1932
        %1994 = vmatpush.msra.mxu0 %v1930
        %1995 = vmatpush.msra.mxu0 %v1928
        %1996 = vmatpush.msra.mxu0 %v1926
        %1997 = vmatpush.msra.mxu0 %v1924
        %1998 = vmatpush.msra.mxu0 %v1922
        %1999 = vmatpush.msra.mxu0 %v1920
        %2000 = vmatmul.f32.gmra.mxu0 %v1916
        %v2001 = vpop.f32.mrf.mxu0
        %v2002 = vadd.f32 0.0, %v2001
        %2003 = vmatmul.f32.gmra.mxu0 %v1918
        %v2004 = vpop.f32.mrf.mxu0
        %v2005 = vadd.f32 0.0, %v2004
        %2006 = vdwg.mxu0
        %2007 = vmatpush.msra.mxu0 %v1982
        %2008 = vmatpush.msra.mxu0 %v1980
        %2009 = vmatpush.msra.mxu0 %v1978
        %2010 = vmatpush.msra.mxu0 %v1976
        %2011 = vmatpush.msra.mxu0 %v1974
        %2012 = vmatpush.msra.mxu0 %v1972
        %2013 = vmatpush.msra.mxu0 %v1970
        %2014 = vmatpush.msra.mxu0 %v1968
        %2015 = vmatpush.msra.mxu0 %v1966
        %2016 = vmatpush.msra.mxu0 %v1964
        %2017 = vmatpush.msra.mxu0 %v1962
        %2018 = vmatpush.msra.mxu0 %v1960
        %2019 = vmatpush.msra.mxu0 %v1958
        %2020 = vmatpush.msra.mxu0 %v1956
        %2021 = vmatpush.msra.mxu0 %v1954
        %2022 = vmatpush.msra.mxu0 %v1952
        %2023 = vmatmul.f32.gmra.mxu0 %v1917
        %v2024 = vpop.f32.mrf.mxu0
        %v2025 = vadd.f32 %v2002, %v2024
        %2026 = vmatmul.f32.gmra.mxu0 %v1919
        %v2027 = vpop.f32.mrf.mxu0
        %v2028 = vadd.f32 %v2005, %v2027
        %2029 = vdwg.mxu0
        %2030 = vmatpush.msra.mxu0 %v1951
        %2031 = vmatpush.msra.mxu0 %v1949
        %2032 = vmatpush.msra.mxu0 %v1947
        %2033 = vmatpush.msra.mxu0 %v1945
        %2034 = vmatpush.msra.mxu0 %v1943
        %2035 = vmatpush.msra.mxu0 %v1941
        %2036 = vmatpush.msra.mxu0 %v1939
        %2037 = vmatpush.msra.mxu0 %v1937
        %2038 = vmatpush.msra.mxu0 %v1935
        %2039 = vmatpush.msra.mxu0 %v1933
        %2040 = vmatpush.msra.mxu0 %v1931
        %2041 = vmatpush.msra.mxu0 %v1929
        %2042 = vmatpush.msra.mxu0 %v1927
        %2043 = vmatpush.msra.mxu0 %v1925
        %2044 = vmatpush.msra.mxu0 %v1923
        %2045 = vmatpush.msra.mxu0 %v1921
        %2046 = vmatmul.f32.gmra.mxu0 %v1916
        %v2047 = vpop.f32.mrf.mxu0
        %v2048 = vadd.f32 0.0, %v2047
        %2049 = vmatmul.f32.gmra.mxu0 %v1918
        %v2050 = vpop.f32.mrf.mxu0
        %v2051 = vadd.f32 0.0, %v2050
        %2052 = vdwg.mxu0
        %2053 = vmatpush.msra.mxu0 %v1983
        %2054 = vmatpush.msra.mxu0 %v1981
        %2055 = vmatpush.msra.mxu0 %v1979
        %2056 = vmatpush.msra.mxu0 %v1977
        %2057 = vmatpush.msra.mxu0 %v1975
        %2058 = vmatpush.msra.mxu0 %v1973
        %2059 = vmatpush.msra.mxu0 %v1971
        %2060 = vmatpush.msra.mxu0 %v1969
        %2061 = vmatpush.msra.mxu0 %v1967
        %2062 = vmatpush.msra.mxu0 %v1965
        %2063 = vmatpush.msra.mxu0 %v1963
        %2064 = vmatpush.msra.mxu0 %v1961
        %2065 = vmatpush.msra.mxu0 %v1959
        %2066 = vmatpush.msra.mxu0 %v1957
        %2067 = vmatpush.msra.mxu0 %v1955
        %2068 = vmatpush.msra.mxu0 %v1953
        %2069 = vmatmul.f32.gmra.mxu0 %v1917
        %v2070 = vpop.f32.mrf.mxu0
        %v2071 = vadd.f32 %v2048, %v2070
        %2072 = vmatmul.f32.gmra.mxu0 %v1919
        %v2073 = vpop.f32.mrf.mxu0
        %v2074 = vadd.f32 %v2051, %v2073
        %2075 = vdwg.mxu0
        %2076 = vmatpush.msra.mxu0 %v1882
        %2077 = vmatpush.msra.mxu0 %v1880
        %2078 = vmatpush.msra.mxu0 %v1878
        %2079 = vmatpush.msra.mxu0 %v1876
        %2080 = vmatpush.msra.mxu0 %v1874
        %2081 = vmatpush.msra.mxu0 %v1872
        %2082 = vmatpush.msra.mxu0 %v1870
        %2083 = vmatpush.msra.mxu0 %v1868
        %2084 = vmatpush.msra.mxu0 %v1866
        %2085 = vmatpush.msra.mxu0 %v1864
        %2086 = vmatpush.msra.mxu0 %v1862
        %2087 = vmatpush.msra.mxu0 %v1860
        %2088 = vmatpush.msra.mxu0 %v1858
        %2089 = vmatpush.msra.mxu0 %v1856
        %2090 = vmatpush.msra.mxu0 %v1854
        %2091 = vmatpush.msra.mxu0 %v1852
        %2092 = vmatmul.f32.gmra.mxu0 %v1825
        %v2093 = vpop.f32.mrf.mxu0
        %v2094 = vadd.f32 %v2025, %v2093
        %2095 = vmatmul.f32.gmra.mxu0 %v1827
        %v2096 = vpop.f32.mrf.mxu0
        %v2097 = vadd.f32 %v2028, %v2096
        %2098 = vdwg.mxu0
        %2099 = vmatpush.msra.mxu0 %v1914
        %2100 = vmatpush.msra.mxu0 %v1912
        %2101 = vmatpush.msra.mxu0 %v1910
        %2102 = vmatpush.msra.mxu0 %v1908
        %2103 = vmatpush.msra.mxu0 %v1906
        %2104 = vmatpush.msra.mxu0 %v1904
        %2105 = vmatpush.msra.mxu0 %v1902
        %2106 = vmatpush.msra.mxu0 %v1900
        %2107 = vmatpush.msra.mxu0 %v1898
        %2108 = vmatpush.msra.mxu0 %v1896
        %2109 = vmatpush.msra.mxu0 %v1894
        %2110 = vmatpush.msra.mxu0 %v1892
        %2111 = vmatpush.msra.mxu0 %v1890
        %2112 = vmatpush.msra.mxu0 %v1888
        %2113 = vmatpush.msra.mxu0 %v1886
        %2114 = vmatpush.msra.mxu0 %v1884
        %2115 = vmatmul.f32.gmra.mxu0 %v1826
        %v2116 = vpop.f32.mrf.mxu0
        %v2117 = vadd.f32 %v2094, %v2116
        %2118 = vmatmul.f32.gmra.mxu0 %v1828
        %v2119 = vpop.f32.mrf.mxu0
        %v2120 = vadd.f32 %v2097, %v2119
        %2121 = vdwg.mxu0
        %2122 = vmatpush.msra.mxu0 %v1883
        %2123 = vmatpush.msra.mxu0 %v1881
        %2124 = vmatpush.msra.mxu0 %v1879
        %2125 = vmatpush.msra.mxu0 %v1877
        %2126 = vmatpush.msra.mxu0 %v1875
        %2127 = vmatpush.msra.mxu0 %v1873
        %2128 = vmatpush.msra.mxu0 %v1871
        %2129 = vmatpush.msra.mxu0 %v1869
        %2130 = vmatpush.msra.mxu0 %v1867
        %2131 = vmatpush.msra.mxu0 %v1865
        %2132 = vmatpush.msra.mxu0 %v1863
        %2133 = vmatpush.msra.mxu0 %v1861
        %2134 = vmatpush.msra.mxu0 %v1859
        %2135 = vmatpush.msra.mxu0 %v1857
        %2136 = vmatpush.msra.mxu0 %v1855
        %2137 = vmatpush.msra.mxu0 %v1853
        %2138 = vmatmul.f32.gmra.mxu0 %v1825
        %v2139 = vpop.f32.mrf.mxu0
        %v2140 = vadd.f32 %v2071, %v2139
        %2141 = vmatmul.f32.gmra.mxu0 %v1827
        %v2142 = vpop.f32.mrf.mxu0
        %v2143 = vadd.f32 %v2074, %v2142
        %2144 = vdwg.mxu0
        %2145 = vmatpush.msra.mxu0 %v1915
        %2146 = vmatpush.msra.mxu0 %v1913
        %2147 = vmatpush.msra.mxu0 %v1911
        %2148 = vmatpush.msra.mxu0 %v1909
        %2149 = vmatpush.msra.mxu0 %v1907
        %2150 = vmatpush.msra.mxu0 %v1905
        %2151 = vmatpush.msra.mxu0 %v1903
        %2152 = vmatpush.msra.mxu0 %v1901
        %2153 = vmatpush.msra.mxu0 %v1899
        %2154 = vmatpush.msra.mxu0 %v1897
        %2155 = vmatpush.msra.mxu0 %v1895
        %2156 = vmatpush.msra.mxu0 %v1893
        %2157 = vmatpush.msra.mxu0 %v1891
        %2158 = vmatpush.msra.mxu0 %v1889
        %2159 = vmatpush.msra.mxu0 %v1887
        %2160 = vmatpush.msra.mxu0 %v1885
        %2161 = vmatmul.f32.gmra.mxu0 %v1826
        %v2162 = vpop.f32.mrf.mxu0
        %v2163 = vadd.f32 %v2140, %v2162
        %2164 = vmatmul.f32.gmra.mxu0 %v1828
        %v2165 = vpop.f32.mrf.mxu0
        %v2166 = vadd.f32 %v2143, %v2165
        %2167 = vdwg.mxu0
        %v2168 = vld [vmem:[#allocation3] sm:$0xfc]
        %v2169 = vld [vmem:[#allocation3 + $0x8] sm:$0xfc]
        %v2170 = vld [vmem:[#allocation3 + $0x10] sm:$0xff]
        %v2171 = vld [vmem:[#allocation3 + $0x18] sm:$0xff]
        %v2172 = vld [vmem:[#allocation3 + $0x20] sm:$0x3]
        %v2173 = vld [vmem:[#allocation3 + $0x28] sm:$0x3]
        %s2174 = scalar_lea.vmem %s4, 1024
        %v2175 = vld [vmem:[%s2174] sm:$0xff]
        %v2176 = vld [vmem:[%s2174 + $0x8] sm:$0xff]
        %v2177 = vld [vmem:[%s2174 + $0x10] sm:$0xff]
        %v2178 = vld [vmem:[%s2174 + $0x18] sm:$0xff]
        %v2179 = vld [vmem:[%s2174 + $0x20] sm:$0xff]
        %v2180 = vld [vmem:[%s2174 + $0x28] sm:$0xff]
        %v2181 = vld [vmem:[%s2174 + $0x30] sm:$0xff]
        %v2182 = vld [vmem:[%s2174 + $0x38] sm:$0xff]
        %v2183 = vld [vmem:[%s2174 + $0x40] sm:$0xff]
        %v2184 = vld [vmem:[%s2174 + $0x48] sm:$0xff]
        %v2185 = vld [vmem:[%s2174 + $0x50] sm:$0xff]
        %v2186 = vld [vmem:[%s2174 + $0x58] sm:$0xff]
        %v2187 = vld [vmem:[%s2174 + $0x60] sm:$0xff]
        %v2188 = vld [vmem:[%s2174 + $0x68] sm:$0xff]
        %v2189 = vld [vmem:[%s2174 + $0x70] sm:$0xff]
        %v2190 = vld [vmem:[%s2174 + $0x78] sm:$0xff]
        %v2191 = vld [vmem:[%s2174 + $0x80] sm:$0xff]
        %v2192 = vld [vmem:[%s2174 + $0x88] sm:$0xff]
        %v2193 = vld [vmem:[%s2174 + $0x90] sm:$0xff]
        %v2194 = vld [vmem:[%s2174 + $0x98] sm:$0xff]
        %v2195 = vld [vmem:[%s2174 + $0xa0] sm:$0xff]
        %v2196 = vld [vmem:[%s2174 + $0xa8] sm:$0xff]
        %v2197 = vld [vmem:[%s2174 + $0xb0] sm:$0xff]
        %v2198 = vld [vmem:[%s2174 + $0xb8] sm:$0xff]
        %v2199 = vld [vmem:[%s2174 + $0xc0] sm:$0xff]
        %v2200 = vld [vmem:[%s2174 + $0xc8] sm:$0xff]
        %v2201 = vld [vmem:[%s2174 + $0xd0] sm:$0xff]
        %v2202 = vld [vmem:[%s2174 + $0xd8] sm:$0xff]
        %v2203 = vld [vmem:[%s2174 + $0xe0] sm:$0xff]
        %v2204 = vld [vmem:[%s2174 + $0xe8] sm:$0xff]
        %v2205 = vld [vmem:[%s2174 + $0xf0] sm:$0xff]
        %v2206 = vld [vmem:[%s2174 + $0xf8] sm:$0xff]
        %v2207 = vld [vmem:[%s2174 + $0x100] sm:$0xff]
        %v2208 = vld [vmem:[%s2174 + $0x108] sm:$0xff]
        %v2209 = vld [vmem:[%s2174 + $0x110] sm:$0xff]
        %v2210 = vld [vmem:[%s2174 + $0x118] sm:$0xff]
        %v2211 = vld [vmem:[%s2174 + $0x120] sm:$0xff]
        %v2212 = vld [vmem:[%s2174 + $0x128] sm:$0xff]
        %v2213 = vld [vmem:[%s2174 + $0x130] sm:$0xff]
        %v2214 = vld [vmem:[%s2174 + $0x138] sm:$0xff]
        %v2215 = vld [vmem:[%s2174 + $0x140] sm:$0xff]
        %v2216 = vld [vmem:[%s2174 + $0x148] sm:$0xff]
        %v2217 = vld [vmem:[%s2174 + $0x150] sm:$0xff]
        %v2218 = vld [vmem:[%s2174 + $0x158] sm:$0xff]
        %v2219 = vld [vmem:[%s2174 + $0x160] sm:$0xff]
        %v2220 = vld [vmem:[%s2174 + $0x168] sm:$0xff]
        %v2221 = vld [vmem:[%s2174 + $0x170] sm:$0xff]
        %v2222 = vld [vmem:[%s2174 + $0x178] sm:$0xff]
        %v2223 = vld [vmem:[%s2174 + $0x180] sm:$0xff]
        %v2224 = vld [vmem:[%s2174 + $0x188] sm:$0xff]
        %v2225 = vld [vmem:[%s2174 + $0x190] sm:$0xff]
        %v2226 = vld [vmem:[%s2174 + $0x198] sm:$0xff]
        %v2227 = vld [vmem:[%s2174 + $0x1a0] sm:$0xff]
        %v2228 = vld [vmem:[%s2174 + $0x1a8] sm:$0xff]
        %v2229 = vld [vmem:[%s2174 + $0x1b0] sm:$0xff]
        %v2230 = vld [vmem:[%s2174 + $0x1b8] sm:$0xff]
        %v2231 = vld [vmem:[%s2174 + $0x1c0] sm:$0xff]
        %v2232 = vld [vmem:[%s2174 + $0x1c8] sm:$0xff]
        %v2233 = vld [vmem:[%s2174 + $0x1d0] sm:$0xff]
        %v2234 = vld [vmem:[%s2174 + $0x1d8] sm:$0xff]
        %v2235 = vld [vmem:[%s2174 + $0x1e0] sm:$0xff]
        %v2236 = vld [vmem:[%s2174 + $0x1e8] sm:$0xff]
        %v2237 = vld [vmem:[%s2174 + $0x1f0] sm:$0xff]
        %v2238 = vld [vmem:[%s2174 + $0x1f8] sm:$0xff]
        %v2245 = vrot.slane %v2168, 2
        %v2246 = vrot.slane %v2170, 2
        %v2247 = vsel %vm1596, %v2245, %v2246
        %v2248 = vrot.slane %v2169, 2
        %v2249 = vrot.slane %v2171, 2
        %v2250 = vsel %vm1596, %v2248, %v2249
        %v2251 = vrot.slane %v2172, 2
        %v2252 = vsel %vm1596, %v2246, %v2251
        %v2253 = vrot.slane %v2173, 2
        %v2254 = vsel %vm1596, %v2249, %v2253
        %2259 = vmatpush.msra.mxu0 %v2205
        %2260 = vmatpush.msra.mxu0 %v2203
        %2261 = vmatpush.msra.mxu0 %v2201
        %2262 = vmatpush.msra.mxu0 %v2199
        %2263 = vmatpush.msra.mxu0 %v2197
        %2264 = vmatpush.msra.mxu0 %v2195
        %2265 = vmatpush.msra.mxu0 %v2193
        %2266 = vmatpush.msra.mxu0 %v2191
        %2267 = vmatpush.msra.mxu0 %v2189
        %2268 = vmatpush.msra.mxu0 %v2187
        %2269 = vmatpush.msra.mxu0 %v2185
        %2270 = vmatpush.msra.mxu0 %v2183
        %2271 = vmatpush.msra.mxu0 %v2181
        %2272 = vmatpush.msra.mxu0 %v2179
        %2273 = vmatpush.msra.mxu0 %v2177
        %2274 = vmatpush.msra.mxu0 %v2175
        %2275 = vmatmul.f32.gmra.mxu0 %v2247
        %v2276 = vpop.f32.mrf.mxu0
        %v2277 = vadd.f32 0.0, %v2276
        %2278 = vmatmul.f32.gmra.mxu0 %v2252
        %v2279 = vpop.f32.mrf.mxu0
        %v2280 = vadd.f32 0.0, %v2279
        %2281 = vdwg.mxu0
        %2282 = vmatpush.msra.mxu0 %v2237
        %2283 = vmatpush.msra.mxu0 %v2235
        %2284 = vmatpush.msra.mxu0 %v2233
        %2285 = vmatpush.msra.mxu0 %v2231
        %2286 = vmatpush.msra.mxu0 %v2229
        %2287 = vmatpush.msra.mxu0 %v2227
        %2288 = vmatpush.msra.mxu0 %v2225
        %2289 = vmatpush.msra.mxu0 %v2223
        %2290 = vmatpush.msra.mxu0 %v2221
        %2291 = vmatpush.msra.mxu0 %v2219
        %2292 = vmatpush.msra.mxu0 %v2217
        %2293 = vmatpush.msra.mxu0 %v2215
        %2294 = vmatpush.msra.mxu0 %v2213
        %2295 = vmatpush.msra.mxu0 %v2211
        %2296 = vmatpush.msra.mxu0 %v2209
        %2297 = vmatpush.msra.mxu0 %v2207
        %2298 = vmatmul.f32.gmra.mxu0 %v2250
        %v2299 = vpop.f32.mrf.mxu0
        %v2300 = vadd.f32 %v2277, %v2299
        %2301 = vmatmul.f32.gmra.mxu0 %v2254
        %v2302 = vpop.f32.mrf.mxu0
        %v2303 = vadd.f32 %v2280, %v2302
        %2304 = vdwg.mxu0
        %2305 = vmatpush.msra.mxu0 %v2206
        %2306 = vmatpush.msra.mxu0 %v2204
        %2307 = vmatpush.msra.mxu0 %v2202
        %2308 = vmatpush.msra.mxu0 %v2200
        %2309 = vmatpush.msra.mxu0 %v2198
        %2310 = vmatpush.msra.mxu0 %v2196
        %2311 = vmatpush.msra.mxu0 %v2194
        %2312 = vmatpush.msra.mxu0 %v2192
        %2313 = vmatpush.msra.mxu0 %v2190
        %2314 = vmatpush.msra.mxu0 %v2188
        %2315 = vmatpush.msra.mxu0 %v2186
        %2316 = vmatpush.msra.mxu0 %v2184
        %2317 = vmatpush.msra.mxu0 %v2182
        %2318 = vmatpush.msra.mxu0 %v2180
        %2319 = vmatpush.msra.mxu0 %v2178
        %2320 = vmatpush.msra.mxu0 %v2176
        %2321 = vmatmul.f32.gmra.mxu0 %v2247
        %v2322 = vpop.f32.mrf.mxu0
        %v2323 = vadd.f32 0.0, %v2322
        %2324 = vmatmul.f32.gmra.mxu0 %v2252
        %v2325 = vpop.f32.mrf.mxu0
        %v2326 = vadd.f32 0.0, %v2325
        %2327 = vdwg.mxu0
        %2328 = vmatpush.msra.mxu0 %v2238
        %2329 = vmatpush.msra.mxu0 %v2236
        %2330 = vmatpush.msra.mxu0 %v2234
        %2331 = vmatpush.msra.mxu0 %v2232
        %2332 = vmatpush.msra.mxu0 %v2230
        %2333 = vmatpush.msra.mxu0 %v2228
        %2334 = vmatpush.msra.mxu0 %v2226
        %2335 = vmatpush.msra.mxu0 %v2224
        %2336 = vmatpush.msra.mxu0 %v2222
        %2337 = vmatpush.msra.mxu0 %v2220
        %2338 = vmatpush.msra.mxu0 %v2218
        %2339 = vmatpush.msra.mxu0 %v2216
        %2340 = vmatpush.msra.mxu0 %v2214
        %2341 = vmatpush.msra.mxu0 %v2212
        %2342 = vmatpush.msra.mxu0 %v2210
        %2343 = vmatpush.msra.mxu0 %v2208
        %2344 = vmatmul.f32.gmra.mxu0 %v2250
        %v2345 = vpop.f32.mrf.mxu0
        %v2346 = vadd.f32 %v2323, %v2345
        %2347 = vmatmul.f32.gmra.mxu0 %v2254
        %v2348 = vpop.f32.mrf.mxu0
        %v2349 = vadd.f32 %v2326, %v2348
        %2350 = vdwg.mxu0
        %v2351 = vadd.f32 %v2117, %v2300
        %v2352 = vadd.f32 %v2163, %v2346
        %v2353 = vadd.f32 %v2120, %v2303
        %v2354 = vadd.f32 %v2166, %v2349
        %v2355 = vperm.slane %v343, 2
        %v2356 = vperm.slane %v344, 2
        %v2357 = vmul.f32 %v2351, %v2355
        %v2358 = vmul.f32 %v2352, %v2356
        %v2359 = vmul.f32 %v2353, %v2355
        %v2360 = vmul.f32 %v2354, %v2356
        %v2361 = vperm.slane %v343, 3
        %v2362 = vperm.slane %v344, 3
        %v2363 = vadd.f32 %v2357, %v2361
        %v2364 = vadd.f32 %v2358, %v2362
        %v2365 = vadd.f32 %v2359, %v2361
        %v2366 = vadd.f32 %v2360, %v2362
        %v2367 = vadd.f32 %v2363, %v713
        %v2368 = vadd.f32 %v2364, %v805
        %v2369 = vadd.f32 %v2365, %v716
        %v2370 = vadd.f32 %v2366, %v808
        %v2371 = vmax.f32 %v2367, 0.0
        %v2372 = vmax.f32 %v2368, 0.0
        %v2373 = vmax.f32 %v2369, 0.0
        %v2374 = vmax.f32 %v2370, 0.0
        %2375 = vst [vmem:[%s342] sm:$0xff] %v2371
        %2376 = vst [vmem:[%s342 + $0x8] sm:$0xff] %v2372
        %2377 = vst [vmem:[%s342 + $0x10] sm:$0xff] %v2373
        %2378 = vst [vmem:[%s342 + $0x18] sm:$0xff] %v2374
        %p2379 = scmp.lt.s32.totalorder %s20, 1
        %s2380 = scalar_select %p2379, %s20, 1
        %s2381 = smul.addr %s2380, 4
        %s2382 = smul.addr %s2381, 8
        %s2383 = scalar_lea.vmem %s8, %s2382
        // Predicated region
        $region57: #{upsampling_resnet_forward.1} parent=51 // pred_check
          %p2384 = pneg %p216
        $region58: #{upsampling_resnet_forward.1} parent=51 // pred_check_branch
          %2386 = sbr.rel (%p2384) target = $region60
        $region59: #{upsampling_resnet_forward.1} parent=51 // pred_region
          _
        $region60: #{upsampling_resnet_forward.1} parent=51 // pred_fallthru
          _
      $region52: #{upsampling_resnet_forward.1} parent=5 // pred_fallthru
        _
      %p2387 = scmp.le.s32.totalorder 2, %s15
      // Predicated region
      $region61: #{upsampling_resnet_forward.1} parent=5 // pred_check
        %p2388 = pneg %p2387
      $region62: #{upsampling_resnet_forward.1} parent=5 // pred_check_branch
        %2390 = sbr.rel (%p2388) target = $region64
      $region63: #{upsampling_resnet_forward.1} parent=5 // pred_region
        %s2391 = ssub.s32 %s15, 2
        // Predicated region
        $region65: #{upsampling_resnet_forward.1} parent=63 // pred_check
          %p2392 = pneg %p222
        $region66: #{upsampling_resnet_forward.1} parent=63 // pred_check_branch
          %2394 = sbr.rel (%p2392) target = $region68
        $region67: #{upsampling_resnet_forward.1} parent=63 // pred_region
          %p2395 = scmp.lt.s32.totalorder %s21, 1
          %s2396 = scalar_select %p2395, %s21, 1
          %s2397 = smul.addr %s2396, 4
          %s2398 = smul.addr %s2397, 8
          %s2399 = scalar_lea.vmem %s8, %s2398
        $region68: #{upsampling_resnet_forward.1} parent=63 // pred_fallthru
          _
      $region64: #{upsampling_resnet_forward.1} parent=5 // pred_fallthru
        _
    $region6: #{upsampling_resnet_forward.1} parent=1 // loop_footer
      %s19 = sadd.s32 1, %s15
    $region7: #{upsampling_resnet_forward.1} parent=1 // loop_footer_branch
      %14 = sbr.rel target = $region3
    $region8: #{upsampling_resnet_forward.1} parent=1 // loop_exit
      _
    %2400 = vsyncpa [#allocation5], 1
    %s2401 = scalar_lea.sflag [#allocation5], 1
    %2402 = vsyncpa %s2401, 1

</llo_original>
